<compile_context>
chip_gen: v5e
topology: v5e:2x2
jax: 0.10.0
libtpu: 0.0.40
codegen_flags: <defaults>
</compile_context>

<pallas_src>
import functools

import jax
import jax.numpy as jnp
from jax.experimental import pallas as pl
from jax.experimental.pallas import tpu as pltpu


def _fused_conv_bn_kernel(x_ref, w_ref, gamma_ref, beta_ref, o_ref, y_ref, *, eps):
    """y = W @ X (1x1 conv), then training-mode BN with batch stats, all in one pass.

    Shapes:
      x_ref:     (Cin, M)   f32
      w_ref:     (Cout, Cin) f32
      gamma_ref: (Cout, 1)  f32
      beta_ref:  (Cout, 1)  f32
      o_ref:     (Cout, M)  f32   (output)
      y_ref:     (Cout, M)  f32   (VMEM scratch for the conv result)
    """
    # 1x1 conv as a matmul on the MXU; result stays in VMEM scratch.
    y_ref[...] = jnp.dot(w_ref[...], x_ref[...], preferred_element_type=jnp.float32)
    y = y_ref[...]

    m = y.shape[1]
    inv_m = jnp.float32(1.0 / m)

    # Per-channel batch statistics (reduce along the lane / M axis).
    ch_sum = jnp.sum(y, axis=1, keepdims=True)          # (Cout, 1)
    ch_sq = jnp.sum(y * y, axis=1, keepdims=True)       # (Cout, 1)
    mean = ch_sum * inv_m
    var = jnp.maximum(ch_sq * inv_m - mean * mean, 0.0)  # clamp: guards cancellation
    inv_std = jax.lax.rsqrt(var + jnp.float32(eps))

    # Fold gamma/beta/mean/var into per-channel scale & shift, then apply.
    scale = gamma_ref[...] * inv_std                     # (Cout, 1)
    shift = beta_ref[...] - mean * scale                 # (Cout, 1)
    o_ref[...] = y * scale + shift


@functools.partial(jax.jit, static_argnames=("eps",))
def conv_bn_forward(x_nchw, conv_w, gamma, beta, eps=1e-3):
    """x_nchw: (N, Cin, H, W); conv_w: (Cout, Cin, 1, 1); gamma/beta: (Cout,)."""
    N, Cin, H, W = x_nchw.shape
    Cout = conv_w.shape[0]
    M = N * H * W

    # Glue (layout only): NCHW -> (Cin, M). For N == 1 this is a pure reshape.
    if N == 1:
        x_mat = x_nchw.reshape(Cin, M).astype(jnp.float32)
    else:
        x_mat = jnp.transpose(x_nchw, (1, 0, 2, 3)).reshape(Cin, M).astype(jnp.float32)

    w_mat = conv_w.reshape(Cout, Cin).astype(jnp.float32)        # (Cout, Cin)
    gamma_col = gamma.reshape(Cout, 1).astype(jnp.float32)
    beta_col = beta.reshape(Cout, 1).astype(jnp.float32)

    kernel = functools.partial(_fused_conv_bn_kernel, eps=eps)

    out_mat = pl.pallas_call(
        kernel,
        out_shape=jax.ShapeDtypeStruct((Cout, M), jnp.float32),
        grid=(1,),
        in_specs=[
            pl.BlockSpec((Cin, M), lambda i: (0, 0)),
            pl.BlockSpec((Cout, Cin), lambda i: (0, 0)),
            pl.BlockSpec((Cout, 1), lambda i: (0, 0)),
            pl.BlockSpec((Cout, 1), lambda i: (0, 0)),
        ],
        out_specs=pl.BlockSpec((Cout, M), lambda i: (0, 0)),
        scratch_shapes=[pltpu.VMEM((Cout, M), jnp.float32)],
        compiler_params=pltpu.CompilerParams(
            dimension_semantics=("arbitrary",)),
    )(x_mat, w_mat, gamma_col, beta_col)

    # Glue (layout only): (Cout, M) -> NCHW. For N == 1 this is a pure reshape.
    if N == 1:
        return out_mat.reshape(1, Cout, H, W)
    return jnp.transpose(out_mat.reshape(Cout, N, H, W), (1, 0, 2, 3))


def _reference(x_nchw, conv_w, gamma, beta, eps=1e-3):
    """Pure-JAX reference of Conv2d(1x1, no bias) + training-mode BatchNorm2d."""
    y = jnp.einsum("nchw,oc->nohw", x_nchw, conv_w.reshape(conv_w.shape[0], -1))
    mean = jnp.mean(y, axis=(0, 2, 3), keepdims=True)
    var = jnp.mean((y - mean) ** 2, axis=(0, 2, 3), keepdims=True)
    y_hat = (y - mean) * jax.lax.rsqrt(var + eps)
    return y_hat * gamma.reshape(1, -1, 1, 1) + beta.reshape(1, -1, 1, 1)


if __name__ == "__main__":
    N, Cin, H, W = 1, 480, 28, 28
    Cout = 80

    key = jax.random.PRNGKey(0)
    kx, kw, kg, kb = jax.random.split(key, 4)

    x = jax.random.normal(kx, (N, Cin, H, W), dtype=jnp.float32)
    conv_w = jax.random.normal(kw, (Cout, Cin, 1, 1), dtype=jnp.float32) * (1.0 / jnp.sqrt(Cin))
    gamma = 1.0 + 0.1 * jax.random.normal(kg, (Cout,), dtype=jnp.float32)
    beta = 0.1 * jax.random.normal(kb, (Cout,), dtype=jnp.float32)

    out = conv_bn_forward(x, conv_w, gamma, beta, eps=1e-3)
    out = jax.block_until_ready(out)

    ref = _reference(x, conv_w, gamma, beta, eps=1e-3)
    assert out.shape == (N, Cout, H, W), out.shape
    assert jnp.max(jnp.abs(out - ref)) < 1e-3, float(jnp.max(jnp.abs(out - ref)))

    print("KERNEL_OK")
</pallas_src>

<mosaic_0001>
module attributes {stable_mosaic.version = 11 : i64} {
  func.func @_fused_conv_bn_kernel(%arg0: i32, %arg1: memref<480x784xf32, #tpu.memory_space<vmem>>, %arg2: memref<80x480xf32, #tpu.memory_space<vmem>>, %arg3: memref<80x1xf32, #tpu.memory_space<vmem>>, %arg4: memref<80x1xf32, #tpu.memory_space<vmem>>, %arg5: memref<80x784xf32, #tpu.memory_space<vmem>>, %arg6: memref<80x784xf32, #tpu.memory_space<vmem>>) attributes {dimension_semantics = [#tpu.dimension_semantics<arbitrary>], iteration_bounds = array<i64: 1>, scalar_prefetch = 0 : i64, scratch_operands = 1 : i64, tpu.core_type = #tpu.core_type<tc>, window_params = [{pipeline_mode = #tpu.pipeline_mode<synchronous>, transform_indices = @transform_0, window_bounds = array<i64: 480, 784>}, {pipeline_mode = #tpu.pipeline_mode<synchronous>, transform_indices = @transform_1, window_bounds = array<i64: 80, 480>}, {pipeline_mode = #tpu.pipeline_mode<synchronous>, transform_indices = @transform_2, window_bounds = array<i64: 80, 1>}, {pipeline_mode = #tpu.pipeline_mode<synchronous>, transform_indices = @transform_3, window_bounds = array<i64: 80, 1>}, {pipeline_mode = #tpu.pipeline_mode<synchronous>, transform_indices = @transform_4, window_bounds = array<i64: 80, 784>}]} {
    %c0 = arith.constant 0 : index
    %c0_0 = arith.constant 0 : index
    %0 = vector.load %arg2[%c0, %c0_0] : memref<80x480xf32, #tpu.memory_space<vmem>>, vector<80x480xf32>
    %c0_1 = arith.constant 0 : index
    %c0_2 = arith.constant 0 : index
    %1 = vector.load %arg1[%c0_1, %c0_2] : memref<480x784xf32, #tpu.memory_space<vmem>>, vector<480x784xf32>
    %cst = arith.constant dense<0.000000e+00> : vector<80x784xf32>
    %2 = tpu.matmul %0, %1, %cst {dimension_numbers = #tpu.dot_dimension_numbers<[1], [0], [0], [1], [0, 0, 1, 1], [], []>} : vector<80x480xf32>, vector<480x784xf32>, vector<80x784xf32> -> vector<80x784xf32>
    %c0_3 = arith.constant 0 : index
    %c0_4 = arith.constant 0 : index
    %3 = vector.load %arg6[%c0_3, %c0_4] : memref<80x784xf32, #tpu.memory_space<vmem>>, vector<80x784xf32>
    tpu.vector_store %arg6[%c0_3, %c0_4], %2 {strides = array<i32>} : memref<80x784xf32, #tpu.memory_space<vmem>>, vector<80x784xf32>,
    %c0_5 = arith.constant 0 : index
    %c0_6 = arith.constant 0 : index
    %4 = vector.load %arg6[%c0_5, %c0_6] : memref<80x784xf32, #tpu.memory_space<vmem>>, vector<80x784xf32>
    %cst_7 = arith.constant dense<0.000000e+00> : vector<80xf32>
    %5 = vector.multi_reduction <add>, %4, %cst_7 [1] : vector<80x784xf32> to vector<80xf32>
    %6 = vector.shape_cast %5 : vector<80xf32> to vector<80x1xf32>
    %7 = arith.mulf %4, %4 : vector<80x784xf32>
    %cst_8 = arith.constant dense<0.000000e+00> : vector<80xf32>
    %8 = vector.multi_reduction <add>, %7, %cst_8 [1] : vector<80x784xf32> to vector<80xf32>
    %9 = vector.shape_cast %8 : vector<80xf32> to vector<80x1xf32>
    %cst_9 = arith.constant 0.00127551018 : f32
    %10 = vector.broadcast %cst_9 : f32 to vector<80x1xf32>
    %11 = arith.mulf %6, %10 : vector<80x1xf32>
    %cst_10 = arith.constant 0.00127551018 : f32
    %12 = vector.broadcast %cst_10 : f32 to vector<80x1xf32>
    %13 = arith.mulf %9, %12 : vector<80x1xf32>
    %14 = arith.mulf %11, %11 : vector<80x1xf32>
    %15 = arith.subf %13, %14 : vector<80x1xf32>
    %cst_11 = arith.constant 0.000000e+00 : f32
    %16 = vector.broadcast %cst_11 : f32 to vector<80x1xf32>
    %17 = arith.maximumf %15, %16 : vector<80x1xf32>
    %cst_12 = arith.constant 1.000000e-03 : f32
    %18 = vector.broadcast %cst_12 : f32 to vector<80x1xf32>
    %19 = arith.addf %17, %18 : vector<80x1xf32>
    %20 = math.rsqrt %19 : vector<80x1xf32>
    %c0_13 = arith.constant 0 : index
    %c0_14 = arith.constant 0 : index
    %21 = vector.load %arg3[%c0_13, %c0_14] : memref<80x1xf32, #tpu.memory_space<vmem>>, vector<80x1xf32>
    %22 = arith.mulf %21, %20 : vector<80x1xf32>
    %c0_15 = arith.constant 0 : index
    %c0_16 = arith.constant 0 : index
    %23 = vector.load %arg4[%c0_15, %c0_16] : memref<80x1xf32, #tpu.memory_space<vmem>>, vector<80x1xf32>
    %24 = arith.mulf %11, %22 : vector<80x1xf32>
    %25 = arith.subf %23, %24 : vector<80x1xf32>
    %26 = vector.broadcast %22 : vector<80x1xf32> to vector<80x784xf32>
    %27 = arith.mulf %4, %26 : vector<80x784xf32>
    %28 = vector.broadcast %25 : vector<80x1xf32> to vector<80x784xf32>
    %29 = arith.addf %27, %28 : vector<80x784xf32>
    %c0_17 = arith.constant 0 : index
    %c0_18 = arith.constant 0 : index
    %30 = vector.load %arg5[%c0_17, %c0_18] : memref<80x784xf32, #tpu.memory_space<vmem>>, vector<80x784xf32>
    tpu.vector_store %arg5[%c0_17, %c0_18], %29 {strides = array<i32>} : memref<80x784xf32, #tpu.memory_space<vmem>>, vector<80x784xf32>,
    return
  }
  func.func @transform_0(%arg0: i32) -> (i32, i32) {
    %c0_i32 = arith.constant 0 : i32
    %c0_i32_0 = arith.constant 0 : i32
    %c0_i32_1 = arith.constant 0 : i32
    return %c0_i32, %c0_i32_0 : i32, i32
  }
  func.func @transform_1(%arg0: i32) -> (i32, i32) {
    %c0_i32 = arith.constant 0 : i32
    %c0_i32_0 = arith.constant 0 : i32
    %c0_i32_1 = arith.constant 0 : i32
    return %c0_i32, %c0_i32_0 : i32, i32
  }
  func.func @transform_2(%arg0: i32) -> (i32, i32) {
    %c0_i32 = arith.constant 0 : i32
    %c0_i32_0 = arith.constant 0 : i32
    %c0_i32_1 = arith.constant 0 : i32
    return %c0_i32, %c0_i32_0 : i32, i32
  }
  func.func @transform_3(%arg0: i32) -> (i32, i32) {
    %c0_i32 = arith.constant 0 : i32
    %c0_i32_0 = arith.constant 0 : i32
    %c0_i32_1 = arith.constant 0 : i32
    return %c0_i32, %c0_i32_0 : i32, i32
  }
  func.func @transform_4(%arg0: i32) -> (i32, i32) {
    %c0_i32 = arith.constant 0 : i32
    %c0_i32_0 = arith.constant 0 : i32
    %c0_i32_1 = arith.constant 0 : i32
    return %c0_i32, %c0_i32_0 : i32, i32
  }
}

</mosaic_0001>

<llo_original>
// kernel: conv_bn_forward.1
$region0: #{conv_bn_forward.1}
  #allocation0 [shape = 'u32[]', space=smem, size = 0x4, offset = 0x4, fixed_abs, tag = 'smem constant byte address 0x4 - core index']
  #allocation1 [shape = 'u32[72,128]{1,0:T(1,128)}', space=vmem, size = 0x9000, scoped, tag = 'internal scratch']
  #allocation2 [shape = 'f32[80,784]{1,0:T(8,128)}', space=vmem, size = 0x46000, scoped, tag = 'scratch operand']
  %s0 = inlined_call_operand.vmem [shape: f32[480,784], index: 0, kind: input, shape index: {}]
  %s1 = inlined_call_operand.vmem [shape: f32[80,480], index: 1, kind: input, shape index: {}]
  %s2 = inlined_call_operand.vmem [shape: f32[80,1], index: 2, kind: input, shape index: {}]
  %s3 = inlined_call_operand.vmem [shape: f32[80,1], index: 3, kind: input, shape index: {}]
  %s4 = inlined_call_operand.vmem [shape: f32[80,784], index: 4, kind: output, shape index: {}]
  %s5 = sld [smem:[#allocation0]]
  $region26: #{conv_bn_forward.1} parent=0
    _
  %s7 = ssub.s32 1, %s5
  %s8 = scalar_select 0, %s7, %s5
  // Predicated region
  $region2: #{conv_bn_forward.1} parent=0 // pred_check
    _
  $region3: #{conv_bn_forward.1} parent=0 // pred_check_branch
    %10 = sbr.rel (0) target = $region5
  $region4: #{conv_bn_forward.1} parent=0 // pred_region
    _
  $region5: #{conv_bn_forward.1} parent=0 // pred_fallthru
    _
  // Predicated region
  $region6: #{conv_bn_forward.1} parent=0 // pred_check
    _
  $region7: #{conv_bn_forward.1} parent=0 // pred_check_branch
    %12 = sbr.rel (0) target = $region9
  $region8: #{conv_bn_forward.1} parent=0 // pred_region
    _
  $region9: #{conv_bn_forward.1} parent=0 // pred_fallthru
    _
  // Predicated region
  $region10: #{conv_bn_forward.1} parent=0 // pred_check
    _
  $region11: #{conv_bn_forward.1} parent=0 // pred_check_branch
    %14 = sbr.rel (0) target = $region13
  $region12: #{conv_bn_forward.1} parent=0 // pred_region
    _
  $region13: #{conv_bn_forward.1} parent=0 // pred_fallthru
    _
  // Predicated region
  $region14: #{conv_bn_forward.1} parent=0 // pred_check
    _
  $region15: #{conv_bn_forward.1} parent=0 // pred_check_branch
    %16 = sbr.rel (0) target = $region17
  $region16: #{conv_bn_forward.1} parent=0 // pred_region
    _
  $region17: #{conv_bn_forward.1} parent=0 // pred_fallthru
    _
  %v17 = vld [vmem:[%s1] sm:$0xff]
  %v18 = vld [vmem:[%s1 + $0x8] sm:$0xff]
  %v19 = vld [vmem:[%s1 + $0x10] sm:$0xff]
  %v20 = vld [vmem:[%s1 + $0x18] sm:$0xff]
  %v21 = vld [vmem:[%s1 + $0x20] sm:$0xff]
  %v22 = vld [vmem:[%s1 + $0x28] sm:$0xff]
  %v23 = vld [vmem:[%s1 + $0x30] sm:$0xff]
  %v24 = vld [vmem:[%s1 + $0x38] sm:$0xff]
  %v25 = vld [vmem:[%s1 + $0x40] sm:$0xff]
  %v26 = vld [vmem:[%s1 + $0x48] sm:$0xff]
  %v27 = vld [vmem:[%s1 + $0x50] sm:$0xff]
  %v28 = vld [vmem:[%s1 + $0x58] sm:$0xff]
  %v29 = vld [vmem:[%s1 + $0x60] sm:$0xff]
  %v30 = vld [vmem:[%s1 + $0x68] sm:$0xff]
  %v31 = vld [vmem:[%s1 + $0x70] sm:$0xff]
  %v32 = vld [vmem:[%s1 + $0x78] sm:$0xff]
  %v33 = vld [vmem:[%s1 + $0x80] sm:$0xff]
  %v34 = vld [vmem:[%s1 + $0x88] sm:$0xff]
  %v35 = vld [vmem:[%s1 + $0x90] sm:$0xff]
  %v36 = vld [vmem:[%s1 + $0x98] sm:$0xff]
  %v37 = vld [vmem:[%s1 + $0xa0] sm:$0xff]
  %v38 = vld [vmem:[%s1 + $0xa8] sm:$0xff]
  %v39 = vld [vmem:[%s1 + $0xb0] sm:$0xff]
  %v40 = vld [vmem:[%s1 + $0xb8] sm:$0xff]
  %v41 = vld [vmem:[%s1 + $0xc0] sm:$0xff]
  %v42 = vld [vmem:[%s1 + $0xc8] sm:$0xff]
  %v43 = vld [vmem:[%s1 + $0xd0] sm:$0xff]
  %v44 = vld [vmem:[%s1 + $0xd8] sm:$0xff]
  %v45 = vld [vmem:[%s1 + $0xe0] sm:$0xff]
  %v46 = vld [vmem:[%s1 + $0xe8] sm:$0xff]
  %v47 = vld [vmem:[%s1 + $0xf0] sm:$0xff]
  %v48 = vld [vmem:[%s1 + $0xf8] sm:$0xff]
  %v49 = vld [vmem:[%s1 + $0x100] sm:$0xff]
  %v50 = vld [vmem:[%s1 + $0x108] sm:$0xff]
  %v51 = vld [vmem:[%s1 + $0x110] sm:$0xff]
  %v52 = vld [vmem:[%s1 + $0x118] sm:$0xff]
  %v53 = vld [vmem:[%s1 + $0x120] sm:$0xff]
  %v54 = vld [vmem:[%s1 + $0x128] sm:$0xff]
  %v55 = vld [vmem:[%s1 + $0x130] sm:$0xff]
  %v56 = vld [vmem:[%s1 + $0x138] sm:$0xff]
  %v57 = vld [vmem:[%s0] sm:$0xff]
  %v58 = vld [vmem:[%s0 + $0x8] sm:$0xff]
  %v59 = vld [vmem:[%s0 + $0x10] sm:$0xff]
  %v60 = vld [vmem:[%s0 + $0x18] sm:$0xff]
  %v61 = vld [vmem:[%s0 + $0x20] sm:$0xff]
  %v62 = vld [vmem:[%s0 + $0x28] sm:$0xff]
  %v63 = vld [vmem:[%s0 + $0x30] sm:$0xff]
  %v64 = vld [vmem:[%s0 + $0x38] sm:$0xff]
  %v65 = vld [vmem:[%s0 + $0x40] sm:$0xff]
  %v66 = vld [vmem:[%s0 + $0x48] sm:$0xff]
  %v67 = vld [vmem:[%s0 + $0x50] sm:$0xff]
  %v68 = vld [vmem:[%s0 + $0x58] sm:$0xff]
  %v69 = vld [vmem:[%s0 + $0x60] sm:$0xff]
  %v70 = vld [vmem:[%s0 + $0x68] sm:$0xff]
  %v71 = vld [vmem:[%s0 + $0x70] sm:$0xff]
  %v72 = vld [vmem:[%s0 + $0x78] sm:$0xff]
  %v73 = vld [vmem:[%s0 + $0x80] sm:$0xff]
  %v74 = vld [vmem:[%s0 + $0x88] sm:$0xff]
  %v75 = vld [vmem:[%s0 + $0x90] sm:$0xff]
  %v76 = vld [vmem:[%s0 + $0x98] sm:$0xff]
  %v77 = vld [vmem:[%s0 + $0xa0] sm:$0xff]
  %v78 = vld [vmem:[%s0 + $0xa8] sm:$0xff]
  %v79 = vld [vmem:[%s0 + $0xb0] sm:$0xff]
  %v80 = vld [vmem:[%s0 + $0xb8] sm:$0xff]
  %v81 = vld [vmem:[%s0 + $0xc0] sm:$0xff]
  %v82 = vld [vmem:[%s0 + $0xc8] sm:$0xff]
  %v83 = vld [vmem:[%s0 + $0xd0] sm:$0xff]
  %v84 = vld [vmem:[%s0 + $0xd8] sm:$0xff]
  %v85 = vld [vmem:[%s0 + $0xe0] sm:$0xff]
  %v86 = vld [vmem:[%s0 + $0xe8] sm:$0xff]
  %v87 = vld [vmem:[%s0 + $0xf0] sm:$0xff]
  %v88 = vld [vmem:[%s0 + $0xf8] sm:$0xff]
  %v89 = vld [vmem:[%s0 + $0x100] sm:$0xff]
  %v90 = vld [vmem:[%s0 + $0x108] sm:$0xff]
  %v91 = vld [vmem:[%s0 + $0x110] sm:$0xff]
  %v92 = vld [vmem:[%s0 + $0x118] sm:$0xff]
  %v93 = vld [vmem:[%s0 + $0x120] sm:$0xff]
  %v94 = vld [vmem:[%s0 + $0x128] sm:$0xff]
  %v95 = vld [vmem:[%s0 + $0x130] sm:$0xff]
  %v96 = vld [vmem:[%s0 + $0x138] sm:$0xff]
  %v97 = vld [vmem:[%s0 + $0x140] sm:$0xff]
  %v98 = vld [vmem:[%s0 + $0x148] sm:$0xff]
  %v99 = vld [vmem:[%s0 + $0x150] sm:$0xff]
  %v100 = vld [vmem:[%s0 + $0x158] sm:$0xff]
  %v101 = vld [vmem:[%s0 + $0x160] sm:$0xff]
  %v102 = vld [vmem:[%s0 + $0x168] sm:$0xff]
  %v103 = vld [vmem:[%s0 + $0x170] sm:$0xff]
  %v104 = vld [vmem:[%s0 + $0x178] sm:$0xff]
  %v105 = vld [vmem:[%s0 + $0x180] sm:$0xff]
  %v106 = vld [vmem:[%s0 + $0x188] sm:$0xff]
  %v107 = vld [vmem:[%s0 + $0x190] sm:$0xff]
  %v108 = vld [vmem:[%s0 + $0x198] sm:$0xff]
  %v109 = vld [vmem:[%s0 + $0x1a0] sm:$0xff]
  %v110 = vld [vmem:[%s0 + $0x1a8] sm:$0xff]
  %v111 = vld [vmem:[%s0 + $0x1b0] sm:$0xff]
  %v112 = vld [vmem:[%s0 + $0x1b8] sm:$0xff]
  %v113 = vld [vmem:[%s0 + $0x1c0] sm:$0xff]
  %v114 = vld [vmem:[%s0 + $0x1c8] sm:$0xff]
  %v115 = vld [vmem:[%s0 + $0x1d0] sm:$0xff]
  %v116 = vld [vmem:[%s0 + $0x1d8] sm:$0xff]
  %v117 = vld [vmem:[%s0 + $0x1e0] sm:$0xff]
  %v118 = vld [vmem:[%s0 + $0x1e8] sm:$0xff]
  %v119 = vld [vmem:[%s0 + $0x1f0] sm:$0xff]
  %v120 = vld [vmem:[%s0 + $0x1f8] sm:$0xff]
  %v121 = vld [vmem:[%s0 + $0x200] sm:$0xff]
  %v122 = vld [vmem:[%s0 + $0x208] sm:$0xff]
  %v123 = vld [vmem:[%s0 + $0x210] sm:$0xff]
  %v124 = vld [vmem:[%s0 + $0x218] sm:$0xff]
  %v125 = vld [vmem:[%s0 + $0x220] sm:$0xff]
  %v126 = vld [vmem:[%s0 + $0x228] sm:$0xff]
  %v127 = vld [vmem:[%s0 + $0x230] sm:$0xff]
  %v128 = vld [vmem:[%s0 + $0x238] sm:$0xff]
  %v129 = vld [vmem:[%s0 + $0x240] sm:$0xff]
  %v130 = vld [vmem:[%s0 + $0x248] sm:$0xff]
  %v131 = vld [vmem:[%s0 + $0x250] sm:$0xff]
  %v132 = vld [vmem:[%s0 + $0x258] sm:$0xff]
  %v133 = vld [vmem:[%s0 + $0x260] sm:$0xff]
  %v134 = vld [vmem:[%s0 + $0x268] sm:$0xff]
  %v135 = vld [vmem:[%s0 + $0x270] sm:$0xff]
  %v136 = vld [vmem:[%s0 + $0x278] sm:$0xff]
  %v137 = vld [vmem:[%s0 + $0x280] sm:$0xff]
  %v138 = vld [vmem:[%s0 + $0x288] sm:$0xff]
  %v139 = vld [vmem:[%s0 + $0x290] sm:$0xff]
  %v140 = vld [vmem:[%s0 + $0x298] sm:$0xff]
  %v141 = vld [vmem:[%s0 + $0x2a0] sm:$0xff]
  %v142 = vld [vmem:[%s0 + $0x2a8] sm:$0xff]
  %v143 = vld [vmem:[%s0 + $0x2b0] sm:$0xff]
  %v144 = vld [vmem:[%s0 + $0x2b8] sm:$0xff]
  %v145 = vld [vmem:[%s0 + $0x2c0] sm:$0xff]
  %v146 = vld [vmem:[%s0 + $0x2c8] sm:$0xff]
  %v147 = vld [vmem:[%s0 + $0x2d0] sm:$0xff]
  %v148 = vld [vmem:[%s0 + $0x2d8] sm:$0xff]
  %v149 = vld [vmem:[%s0 + $0x2e0] sm:$0xff]
  %v150 = vld [vmem:[%s0 + $0x2e8] sm:$0xff]
  %v151 = vld [vmem:[%s0 + $0x2f0] sm:$0xff]
  %v152 = vld [vmem:[%s0 + $0x2f8] sm:$0xff]
  %v153 = vld [vmem:[%s0 + $0x300] sm:$0xff]
  %v154 = vld [vmem:[%s0 + $0x308] sm:$0xff]
  %v155 = vld [vmem:[%s0 + $0x310] sm:$0xff]
  %v156 = vld [vmem:[%s0 + $0x318] sm:$0xff]
  %v157 = vld [vmem:[%s0 + $0x320] sm:$0xff]
  %v158 = vld [vmem:[%s0 + $0x328] sm:$0xff]
  %v159 = vld [vmem:[%s0 + $0x330] sm:$0xff]
  %v160 = vld [vmem:[%s0 + $0x338] sm:$0xff]
  %v161 = vld [vmem:[%s0 + $0x340] sm:$0xff]
  %v162 = vld [vmem:[%s0 + $0x348] sm:$0xff]
  %v163 = vld [vmem:[%s0 + $0x350] sm:$0xff]
  %v164 = vld [vmem:[%s0 + $0x358] sm:$0xff]
  %v165 = vld [vmem:[%s0 + $0x360] sm:$0xff]
  %v166 = vld [vmem:[%s0 + $0x368] sm:$0xff]
  %v167 = vld [vmem:[%s0 + $0x370] sm:$0xff]
  %v168 = vld [vmem:[%s0 + $0x378] sm:$0xff]
  %v169 = vld [vmem:[%s0 + $0x380] sm:$0xff]
  %v170 = vld [vmem:[%s0 + $0x388] sm:$0xff]
  %v171 = vld [vmem:[%s0 + $0x390] sm:$0xff]
  %v172 = vld [vmem:[%s0 + $0x398] sm:$0xff]
  %v173 = vld [vmem:[%s0 + $0x3a0] sm:$0xff]
  %v174 = vld [vmem:[%s0 + $0x3a8] sm:$0xff]
  %v175 = vld [vmem:[%s0 + $0x3b0] sm:$0xff]
  %v176 = vld [vmem:[%s0 + $0x3b8] sm:$0xff]
  %v177 = vld [vmem:[%s0 + $0x3c0] sm:$0xff]
  %v178 = vld [vmem:[%s0 + $0x3c8] sm:$0xff]
  %v179 = vld [vmem:[%s0 + $0x3d0] sm:$0xff]
  %v180 = vld [vmem:[%s0 + $0x3d8] sm:$0xff]
  %v181 = vld [vmem:[%s0 + $0x3e0] sm:$0xff]
  %v182 = vld [vmem:[%s0 + $0x3e8] sm:$0xff]
  %v183 = vld [vmem:[%s0 + $0x3f0] sm:$0xff]
  %v184 = vld [vmem:[%s0 + $0x3f8] sm:$0xff]
  %v185 = vld [vmem:[%s0 + $0x400] sm:$0xff]
  %v186 = vld [vmem:[%s0 + $0x408] sm:$0xff]
  %v187 = vld [vmem:[%s0 + $0x410] sm:$0xff]
  %v188 = vld [vmem:[%s0 + $0x418] sm:$0xff]
  %v189 = vld [vmem:[%s0 + $0x420] sm:$0xff]
  %v190 = vld [vmem:[%s0 + $0x428] sm:$0xff]
  %v191 = vld [vmem:[%s0 + $0x430] sm:$0xff]
  %v192 = vld [vmem:[%s0 + $0x438] sm:$0xff]
  %v193 = vld [vmem:[%s0 + $0x440] sm:$0xff]
  %v194 = vld [vmem:[%s0 + $0x448] sm:$0xff]
  %v195 = vld [vmem:[%s0 + $0x450] sm:$0xff]
  %v196 = vld [vmem:[%s0 + $0x458] sm:$0xff]
  %v197 = vld [vmem:[%s0 + $0x460] sm:$0xff]
  %v198 = vld [vmem:[%s0 + $0x468] sm:$0xff]
  %v199 = vld [vmem:[%s0 + $0x470] sm:$0xff]
  %v200 = vld [vmem:[%s0 + $0x478] sm:$0xff]
  %v201 = vld [vmem:[%s0 + $0x480] sm:$0xff]
  %v202 = vld [vmem:[%s0 + $0x488] sm:$0xff]
  %v203 = vld [vmem:[%s0 + $0x490] sm:$0xff]
  %v204 = vld [vmem:[%s0 + $0x498] sm:$0xff]
  %v205 = vld [vmem:[%s0 + $0x4a0] sm:$0xff]
  %v206 = vld [vmem:[%s0 + $0x4a8] sm:$0xff]
  %v207 = vld [vmem:[%s0 + $0x4b0] sm:$0xff]
  %v208 = vld [vmem:[%s0 + $0x4b8] sm:$0xff]
  %v209 = vld [vmem:[%s0 + $0x4c0] sm:$0xff]
  %v210 = vld [vmem:[%s0 + $0x4c8] sm:$0xff]
  %v211 = vld [vmem:[%s0 + $0x4d0] sm:$0xff]
  %v212 = vld [vmem:[%s0 + $0x4d8] sm:$0xff]
  %v213 = vld [vmem:[%s0 + $0x4e0] sm:$0xff]
  %v214 = vld [vmem:[%s0 + $0x4e8] sm:$0xff]
  %v215 = vld [vmem:[%s0 + $0x4f0] sm:$0xff]
  %v216 = vld [vmem:[%s0 + $0x4f8] sm:$0xff]
  %v217 = vld [vmem:[%s0 + $0x500] sm:$0xff]
  %v218 = vld [vmem:[%s0 + $0x508] sm:$0xff]
  %v219 = vld [vmem:[%s0 + $0x510] sm:$0xff]
  %v220 = vld [vmem:[%s0 + $0x518] sm:$0xff]
  %v221 = vld [vmem:[%s0 + $0x520] sm:$0xff]
  %v222 = vld [vmem:[%s0 + $0x528] sm:$0xff]
  %v223 = vld [vmem:[%s0 + $0x530] sm:$0xff]
  %v224 = vld [vmem:[%s0 + $0x538] sm:$0xff]
  %v225 = vld [vmem:[%s0 + $0x540] sm:$0xff]
  %v226 = vld [vmem:[%s0 + $0x548] sm:$0xff]
  %v227 = vld [vmem:[%s0 + $0x550] sm:$0xff]
  %v228 = vld [vmem:[%s0 + $0x558] sm:$0xff]
  %v229 = vld [vmem:[%s0 + $0x560] sm:$0xff]
  %v230 = vld [vmem:[%s0 + $0x568] sm:$0xff]
  %v231 = vld [vmem:[%s0 + $0x570] sm:$0xff]
  %v232 = vld [vmem:[%s0 + $0x578] sm:$0xff]
  %v233 = vld [vmem:[%s0 + $0x580] sm:$0xff]
  %v234 = vld [vmem:[%s0 + $0x588] sm:$0xff]
  %v235 = vld [vmem:[%s0 + $0x590] sm:$0xff]
  %v236 = vld [vmem:[%s0 + $0x598] sm:$0xff]
  %v237 = vld [vmem:[%s0 + $0x5a0] sm:$0xff]
  %v238 = vld [vmem:[%s0 + $0x5a8] sm:$0xff]
  %v239 = vld [vmem:[%s0 + $0x5b0] sm:$0xff]
  %v240 = vld [vmem:[%s0 + $0x5b8] sm:$0xff]
  %v241 = vld [vmem:[%s0 + $0x5c0] sm:$0xff]
  %v242 = vld [vmem:[%s0 + $0x5c8] sm:$0xff]
  %v243 = vld [vmem:[%s0 + $0x5d0] sm:$0xff]
  %v244 = vld [vmem:[%s0 + $0x5d8] sm:$0xff]
  %v245 = vld [vmem:[%s0 + $0x5e0] sm:$0xff]
  %v246 = vld [vmem:[%s0 + $0x5e8] sm:$0xff]
  %v247 = vld [vmem:[%s0 + $0x5f0] sm:$0xff]
  %v248 = vld [vmem:[%s0 + $0x5f8] sm:$0xff]
  %v249 = vld [vmem:[%s0 + $0x600] sm:$0xff]
  %v250 = vld [vmem:[%s0 + $0x608] sm:$0xff]
  %v251 = vld [vmem:[%s0 + $0x610] sm:$0xff]
  %v252 = vld [vmem:[%s0 + $0x618] sm:$0xff]
  %v253 = vld [vmem:[%s0 + $0x620] sm:$0xff]
  %v254 = vld [vmem:[%s0 + $0x628] sm:$0xff]
  %v255 = vld [vmem:[%s0 + $0x630] sm:$0xff]
  %v256 = vld [vmem:[%s0 + $0x638] sm:$0xff]
  %v257 = vld [vmem:[%s0 + $0x640] sm:$0xff]
  %v258 = vld [vmem:[%s0 + $0x648] sm:$0xff]
  %v259 = vld [vmem:[%s0 + $0x650] sm:$0xff]
  %v260 = vld [vmem:[%s0 + $0x658] sm:$0xff]
  %v261 = vld [vmem:[%s0 + $0x660] sm:$0xff]
  %v262 = vld [vmem:[%s0 + $0x668] sm:$0xff]
  %v263 = vld [vmem:[%s0 + $0x670] sm:$0xff]
  %v264 = vld [vmem:[%s0 + $0x678] sm:$0xff]
  %v265 = vld [vmem:[%s0 + $0x680] sm:$0xff]
  %v266 = vld [vmem:[%s0 + $0x688] sm:$0xff]
  %v267 = vld [vmem:[%s0 + $0x690] sm:$0xff]
  %v268 = vld [vmem:[%s0 + $0x698] sm:$0xff]
  %v269 = vld [vmem:[%s0 + $0x6a0] sm:$0xff]
  %v270 = vld [vmem:[%s0 + $0x6a8] sm:$0xff]
  %v271 = vld [vmem:[%s0 + $0x6b0] sm:$0xff]
  %v272 = vld [vmem:[%s0 + $0x6b8] sm:$0xff]
  %v273 = vld [vmem:[%s0 + $0x6c0] sm:$0xff]
  %v274 = vld [vmem:[%s0 + $0x6c8] sm:$0xff]
  %v275 = vld [vmem:[%s0 + $0x6d0] sm:$0xff]
  %v276 = vld [vmem:[%s0 + $0x6d8] sm:$0xff]
  %v277 = vld [vmem:[%s0 + $0x6e0] sm:$0xff]
  %v278 = vld [vmem:[%s0 + $0x6e8] sm:$0xff]
  %v279 = vld [vmem:[%s0 + $0x6f0] sm:$0xff]
  %v280 = vld [vmem:[%s0 + $0x6f8] sm:$0xff]
  %v281 = vld [vmem:[%s0 + $0x700] sm:$0xff]
  %v282 = vld [vmem:[%s0 + $0x708] sm:$0xff]
  %v283 = vld [vmem:[%s0 + $0x710] sm:$0xff]
  %v284 = vld [vmem:[%s0 + $0x718] sm:$0xff]
  %v285 = vld [vmem:[%s0 + $0x720] sm:$0xff]
  %v286 = vld [vmem:[%s0 + $0x728] sm:$0xff]
  %v287 = vld [vmem:[%s0 + $0x730] sm:$0xff]
  %v288 = vld [vmem:[%s0 + $0x738] sm:$0xff]
  %v289 = vld [vmem:[%s0 + $0x740] sm:$0xff]
  %v290 = vld [vmem:[%s0 + $0x748] sm:$0xff]
  %v291 = vld [vmem:[%s0 + $0x750] sm:$0xff]
  %v292 = vld [vmem:[%s0 + $0x758] sm:$0xff]
  %v293 = vld [vmem:[%s0 + $0x760] sm:$0xff]
  %v294 = vld [vmem:[%s0 + $0x768] sm:$0xff]
  %v295 = vld [vmem:[%s0 + $0x770] sm:$0xff]
  %v296 = vld [vmem:[%s0 + $0x778] sm:$0xff]
  %v297 = vld [vmem:[%s0 + $0x780] sm:$0xff]
  %v298 = vld [vmem:[%s0 + $0x788] sm:$0xff]
  %v299 = vld [vmem:[%s0 + $0x790] sm:$0xff]
  %v300 = vld [vmem:[%s0 + $0x798] sm:$0xff]
  %v301 = vld [vmem:[%s0 + $0x7a0] sm:$0xff]
  %v302 = vld [vmem:[%s0 + $0x7a8] sm:$0xff]
  %v303 = vld [vmem:[%s0 + $0x7b0] sm:$0xff]
  %v304 = vld [vmem:[%s0 + $0x7b8] sm:$0xff]
  %v305 = vld [vmem:[%s0 + $0x7c0] sm:$0xff]
  %v306 = vld [vmem:[%s0 + $0x7c8] sm:$0xff]
  %v307 = vld [vmem:[%s0 + $0x7d0] sm:$0xff]
  %v308 = vld [vmem:[%s0 + $0x7d8] sm:$0xff]
  %v309 = vld [vmem:[%s0 + $0x7e0] sm:$0xff]
  %v310 = vld [vmem:[%s0 + $0x7e8] sm:$0xff]
  %v311 = vld [vmem:[%s0 + $0x7f0] sm:$0xff]
  %v312 = vld [vmem:[%s0 + $0x7f8] sm:$0xff]
  %v313 = vld [vmem:[%s0 + $0x800] sm:$0xff]
  %v314 = vld [vmem:[%s0 + $0x808] sm:$0xff]
  %v315 = vld [vmem:[%s0 + $0x810] sm:$0xff]
  %v316 = vld [vmem:[%s0 + $0x818] sm:$0xff]
  %v317 = vld [vmem:[%s0 + $0x820] sm:$0xff]
  %v318 = vld [vmem:[%s0 + $0x828] sm:$0xff]
  %v319 = vld [vmem:[%s0 + $0x830] sm:$0xff]
  %v320 = vld [vmem:[%s0 + $0x838] sm:$0xff]
  %v321 = vld [vmem:[%s0 + $0x840] sm:$0xff]
  %v322 = vld [vmem:[%s0 + $0x848] sm:$0xff]
  %v323 = vld [vmem:[%s0 + $0x850] sm:$0xff]
  %v324 = vld [vmem:[%s0 + $0x858] sm:$0xff]
  %v325 = vld [vmem:[%s0 + $0x860] sm:$0xff]
  %v326 = vld [vmem:[%s0 + $0x868] sm:$0xff]
  %v327 = vld [vmem:[%s0 + $0x870] sm:$0xff]
  %v328 = vld [vmem:[%s0 + $0x878] sm:$0xff]
  %v329 = vld [vmem:[%s0 + $0x880] sm:$0xff]
  %v330 = vld [vmem:[%s0 + $0x888] sm:$0xff]
  %v331 = vld [vmem:[%s0 + $0x890] sm:$0xff]
  %v332 = vld [vmem:[%s0 + $0x898] sm:$0xff]
  %v333 = vld [vmem:[%s0 + $0x8a0] sm:$0xff]
  %v334 = vld [vmem:[%s0 + $0x8a8] sm:$0xff]
  %v335 = vld [vmem:[%s0 + $0x8b0] sm:$0xff]
  %v336 = vld [vmem:[%s0 + $0x8b8] sm:$0xff]
  %v337 = vld [vmem:[%s0 + $0x8c0] sm:$0xff]
  %v338 = vld [vmem:[%s0 + $0x8c8] sm:$0xff]
  %v339 = vld [vmem:[%s0 + $0x8d0] sm:$0xff]
  %v340 = vld [vmem:[%s0 + $0x8d8] sm:$0xff]
  %v341 = vld [vmem:[%s0 + $0x8e0] sm:$0xff]
  %v342 = vld [vmem:[%s0 + $0x8e8] sm:$0xff]
  %v343 = vld [vmem:[%s0 + $0x8f0] sm:$0xff]
  %v344 = vld [vmem:[%s0 + $0x8f8] sm:$0xff]
  %v345 = vld [vmem:[%s0 + $0x900] sm:$0xff]
  %v346 = vld [vmem:[%s0 + $0x908] sm:$0xff]
  %v347 = vld [vmem:[%s0 + $0x910] sm:$0xff]
  %v348 = vld [vmem:[%s0 + $0x918] sm:$0xff]
  %v349 = vld [vmem:[%s0 + $0x920] sm:$0xff]
  %v350 = vld [vmem:[%s0 + $0x928] sm:$0xff]
  %v351 = vld [vmem:[%s0 + $0x930] sm:$0xff]
  %v352 = vld [vmem:[%s0 + $0x938] sm:$0xff]
  %v353 = vld [vmem:[%s0 + $0x940] sm:$0xff]
  %v354 = vld [vmem:[%s0 + $0x948] sm:$0xff]
  %v355 = vld [vmem:[%s0 + $0x950] sm:$0xff]
  %v356 = vld [vmem:[%s0 + $0x958] sm:$0xff]
  %v357 = vld [vmem:[%s0 + $0x960] sm:$0xff]
  %v358 = vld [vmem:[%s0 + $0x968] sm:$0xff]
  %v359 = vld [vmem:[%s0 + $0x970] sm:$0xff]
  %v360 = vld [vmem:[%s0 + $0x978] sm:$0xff]
  %v361 = vld [vmem:[%s0 + $0x980] sm:$0xff]
  %v362 = vld [vmem:[%s0 + $0x988] sm:$0xff]
  %v363 = vld [vmem:[%s0 + $0x990] sm:$0xff]
  %v364 = vld [vmem:[%s0 + $0x998] sm:$0xff]
  %v365 = vld [vmem:[%s0 + $0x9a0] sm:$0xff]
  %v366 = vld [vmem:[%s0 + $0x9a8] sm:$0xff]
  %v367 = vld [vmem:[%s0 + $0x9b0] sm:$0xff]
  %v368 = vld [vmem:[%s0 + $0x9b8] sm:$0xff]
  %v369 = vld [vmem:[%s0 + $0x9c0] sm:$0xff]
  %v370 = vld [vmem:[%s0 + $0x9c8] sm:$0xff]
  %v371 = vld [vmem:[%s0 + $0x9d0] sm:$0xff]
  %v372 = vld [vmem:[%s0 + $0x9d8] sm:$0xff]
  %v373 = vld [vmem:[%s0 + $0x9e0] sm:$0xff]
  %v374 = vld [vmem:[%s0 + $0x9e8] sm:$0xff]
  %v375 = vld [vmem:[%s0 + $0x9f0] sm:$0xff]
  %v376 = vld [vmem:[%s0 + $0x9f8] sm:$0xff]
  %v377 = vld [vmem:[%s0 + $0xa00] sm:$0xff]
  %v378 = vld [vmem:[%s0 + $0xa08] sm:$0xff]
  %v379 = vld [vmem:[%s0 + $0xa10] sm:$0xff]
  %v380 = vld [vmem:[%s0 + $0xa18] sm:$0xff]
  %v381 = vld [vmem:[%s0 + $0xa20] sm:$0xff]
  %v382 = vld [vmem:[%s0 + $0xa28] sm:$0xff]
  %v383 = vld [vmem:[%s0 + $0xa30] sm:$0xff]
  %v384 = vld [vmem:[%s0 + $0xa38] sm:$0xff]
  %v385 = vld [vmem:[%s0 + $0xa40] sm:$0xff]
  %v386 = vld [vmem:[%s0 + $0xa48] sm:$0xff]
  %v387 = vld [vmem:[%s0 + $0xa50] sm:$0xff]
  %v388 = vld [vmem:[%s0 + $0xa58] sm:$0xff]
  %v389 = vld [vmem:[%s0 + $0xa60] sm:$0xff]
  %v390 = vld [vmem:[%s0 + $0xa68] sm:$0xff]
  %v391 = vld [vmem:[%s0 + $0xa70] sm:$0xff]
  %v392 = vld [vmem:[%s0 + $0xa78] sm:$0xff]
  %v393 = vld [vmem:[%s0 + $0xa80] sm:$0xff]
  %v394 = vld [vmem:[%s0 + $0xa88] sm:$0xff]
  %v395 = vld [vmem:[%s0 + $0xa90] sm:$0xff]
  %v396 = vld [vmem:[%s0 + $0xa98] sm:$0xff]
  %v397 = vld [vmem:[%s0 + $0xaa0] sm:$0xff]
  %v398 = vld [vmem:[%s0 + $0xaa8] sm:$0xff]
  %v399 = vld [vmem:[%s0 + $0xab0] sm:$0xff]
  %v400 = vld [vmem:[%s0 + $0xab8] sm:$0xff]
  %v401 = vld [vmem:[%s0 + $0xac0] sm:$0xff]
  %v402 = vld [vmem:[%s0 + $0xac8] sm:$0xff]
  %v403 = vld [vmem:[%s0 + $0xad0] sm:$0xff]
  %v404 = vld [vmem:[%s0 + $0xad8] sm:$0xff]
  %v405 = vld [vmem:[%s0 + $0xae0] sm:$0xff]
  %v406 = vld [vmem:[%s0 + $0xae8] sm:$0xff]
  %v407 = vld [vmem:[%s0 + $0xaf0] sm:$0xff]
  %v408 = vld [vmem:[%s0 + $0xaf8] sm:$0xff]
  %v409 = vld [vmem:[%s0 + $0xb00] sm:$0xff]
  %v410 = vld [vmem:[%s0 + $0xb08] sm:$0xff]
  %v411 = vld [vmem:[%s0 + $0xb10] sm:$0xff]
  %v412 = vld [vmem:[%s0 + $0xb18] sm:$0xff]
  %v413 = vld [vmem:[%s0 + $0xb20] sm:$0xff]
  %v414 = vld [vmem:[%s0 + $0xb28] sm:$0xff]
  %v415 = vld [vmem:[%s0 + $0xb30] sm:$0xff]
  %v416 = vld [vmem:[%s0 + $0xb38] sm:$0xff]
  %v417 = vld [vmem:[%s0 + $0xb40] sm:$0xff]
  %v418 = vld [vmem:[%s0 + $0xb48] sm:$0xff]
  %v419 = vld [vmem:[%s0 + $0xb50] sm:$0xff]
  %v420 = vld [vmem:[%s0 + $0xb58] sm:$0xff]
  %v421 = vld [vmem:[%s0 + $0xb60] sm:$0xff]
  %v422 = vld [vmem:[%s0 + $0xb68] sm:$0xff]
  %v423 = vld [vmem:[%s0 + $0xb70] sm:$0xff]
  %v424 = vld [vmem:[%s0 + $0xb78] sm:$0xff]
  %v425 = vld [vmem:[%s0 + $0xb80] sm:$0xff]
  %v426 = vld [vmem:[%s0 + $0xb88] sm:$0xff]
  %v427 = vld [vmem:[%s0 + $0xb90] sm:$0xff]
  %v428 = vld [vmem:[%s0 + $0xb98] sm:$0xff]
  %v429 = vld [vmem:[%s0 + $0xba0] sm:$0xff]
  %v430 = vld [vmem:[%s0 + $0xba8] sm:$0xff]
  %v431 = vld [vmem:[%s0 + $0xbb0] sm:$0xff]
  %v432 = vld [vmem:[%s0 + $0xbb8] sm:$0xff]
  %v433 = vld [vmem:[%s0 + $0xbc0] sm:$0xff]
  %v434 = vld [vmem:[%s0 + $0xbc8] sm:$0xff]
  %v435 = vld [vmem:[%s0 + $0xbd0] sm:$0xff]
  %v436 = vld [vmem:[%s0 + $0xbd8] sm:$0xff]
  %v437 = vld [vmem:[%s0 + $0xbe0] sm:$0xff]
  %v438 = vld [vmem:[%s0 + $0xbe8] sm:$0xff]
  %v439 = vld [vmem:[%s0 + $0xbf0] sm:$0xff]
  %v440 = vld [vmem:[%s0 + $0xbf8] sm:$0xff]
  %v441 = vld [vmem:[%s0 + $0xc00] sm:$0xff]
  %v442 = vld [vmem:[%s0 + $0xc08] sm:$0xff]
  %v443 = vld [vmem:[%s0 + $0xc10] sm:$0xff]
  %v444 = vld [vmem:[%s0 + $0xc18] sm:$0xff]
  %v445 = vld [vmem:[%s0 + $0xc20] sm:$0xff]
  %v446 = vld [vmem:[%s0 + $0xc28] sm:$0xff]
  %v447 = vld [vmem:[%s0 + $0xc30] sm:$0xff]
  %v448 = vld [vmem:[%s0 + $0xc38] sm:$0xff]
  %v449 = vld [vmem:[%s0 + $0xc40] sm:$0xff]
  %v450 = vld [vmem:[%s0 + $0xc48] sm:$0xff]
  %v451 = vld [vmem:[%s0 + $0xc50] sm:$0xff]
  %v452 = vld [vmem:[%s0 + $0xc58] sm:$0xff]
  %v453 = vld [vmem:[%s0 + $0xc60] sm:$0xff]
  %v454 = vld [vmem:[%s0 + $0xc68] sm:$0xff]
  %v455 = vld [vmem:[%s0 + $0xc70] sm:$0xff]
  %v456 = vld [vmem:[%s0 + $0xc78] sm:$0xff]
  %v457 = vld [vmem:[%s0 + $0xc80] sm:$0xff]
  %v458 = vld [vmem:[%s0 + $0xc88] sm:$0xff]
  %v459 = vld [vmem:[%s0 + $0xc90] sm:$0xff]
  %v460 = vld [vmem:[%s0 + $0xc98] sm:$0xff]
  %v461 = vld [vmem:[%s0 + $0xca0] sm:$0xff]
  %v462 = vld [vmem:[%s0 + $0xca8] sm:$0xff]
  %v463 = vld [vmem:[%s0 + $0xcb0] sm:$0xff]
  %v464 = vld [vmem:[%s0 + $0xcb8] sm:$0xff]
  %v465 = vld [vmem:[%s0 + $0xcc0] sm:$0xff]
  %v466 = vld [vmem:[%s0 + $0xcc8] sm:$0xff]
  %v467 = vld [vmem:[%s0 + $0xcd0] sm:$0xff]
  %v468 = vld [vmem:[%s0 + $0xcd8] sm:$0xff]
  %v469 = vld [vmem:[%s0 + $0xce0] sm:$0xff]
  %v470 = vld [vmem:[%s0 + $0xce8] sm:$0xff]
  %v471 = vld [vmem:[%s0 + $0xcf0] sm:$0xff]
  %v472 = vld [vmem:[%s0 + $0xcf8] sm:$0xff]
  %v473 = vld [vmem:[%s0 + $0xd00] sm:$0xff]
  %v474 = vld [vmem:[%s0 + $0xd08] sm:$0xff]
  %v475 = vld [vmem:[%s0 + $0xd10] sm:$0xff]
  %v476 = vld [vmem:[%s0 + $0xd18] sm:$0xff]
  %vm477 = vcmask 785408
  %v479 = vsel %vm477, %v20, 0
  %v482 = vsel %vm477, %v24, 0
  %v485 = vsel %vm477, %v28, 0
  %v488 = vsel %vm477, %v32, 0
  %v491 = vsel %vm477, %v36, 0
  %v494 = vsel %vm477, %v40, 0
  %v497 = vsel %vm477, %v44, 0
  %v500 = vsel %vm477, %v48, 0
  %v503 = vsel %vm477, %v52, 0
  %v506 = vsel %vm477, %v56, 0
  %508 = vmatpush.msra.mxu0 %v162
  %509 = vmatpush.msra.mxu0 %v155
  %510 = vmatpush.msra.mxu0 %v148
  %511 = vmatpush.msra.mxu0 %v141
  %512 = vmatpush.msra.mxu0 %v134
  %513 = vmatpush.msra.mxu0 %v127
  %514 = vmatpush.msra.mxu0 %v120
  %515 = vmatpush.msra.mxu0 %v113
  %516 = vmatpush.msra.mxu0 %v106
  %517 = vmatpush.msra.mxu0 %v99
  %518 = vmatpush.msra.mxu0 %v92
  %519 = vmatpush.msra.mxu0 %v85
  %520 = vmatpush.msra.mxu0 %v78
  %521 = vmatpush.msra.mxu0 %v71
  %522 = vmatpush.msra.mxu0 %v64
  %523 = vmatpush.msra.mxu0 %v57
  %524 = vmatmul.f32.gmra.mxu0 %v17
  %v525 = vpop.f32.mrf.mxu0
  %v526 = vadd.f32 0.0, %v525
  %527 = vmatmul.f32.gmra.mxu0 %v21
  %v528 = vpop.f32.mrf.mxu0
  %v529 = vadd.f32 0.0, %v528
  %530 = vmatmul.f32.gmra.mxu0 %v25
  %v531 = vpop.f32.mrf.mxu0
  %v532 = vadd.f32 0.0, %v531
  %533 = vmatmul.f32.gmra.mxu0 %v29
  %v534 = vpop.f32.mrf.mxu0
  %v535 = vadd.f32 0.0, %v534
  %536 = vmatmul.f32.gmra.mxu0 %v33
  %v537 = vpop.f32.mrf.mxu0
  %v538 = vadd.f32 0.0, %v537
  %539 = vmatmul.f32.gmra.mxu0 %v37
  %v540 = vpop.f32.mrf.mxu0
  %v541 = vadd.f32 0.0, %v540
  %542 = vmatmul.f32.gmra.mxu0 %v41
  %v543 = vpop.f32.mrf.mxu0
  %v544 = vadd.f32 0.0, %v543
  %545 = vmatmul.f32.gmra.mxu0 %v45
  %v546 = vpop.f32.mrf.mxu0
  %v547 = vadd.f32 0.0, %v546
  %548 = vmatmul.f32.gmra.mxu0 %v49
  %v549 = vpop.f32.mrf.mxu0
  %v550 = vadd.f32 0.0, %v549
  %551 = vmatmul.f32.gmra.mxu0 %v53
  %v552 = vpop.f32.mrf.mxu0
  %v553 = vadd.f32 0.0, %v552
  %554 = vdwg.mxu0
  %555 = vmatpush.msra.mxu0 %v274
  %556 = vmatpush.msra.mxu0 %v267
  %557 = vmatpush.msra.mxu0 %v260
  %558 = vmatpush.msra.mxu0 %v253
  %559 = vmatpush.msra.mxu0 %v246
  %560 = vmatpush.msra.mxu0 %v239
  %561 = vmatpush.msra.mxu0 %v232
  %562 = vmatpush.msra.mxu0 %v225
  %563 = vmatpush.msra.mxu0 %v218
  %564 = vmatpush.msra.mxu0 %v211
  %565 = vmatpush.msra.mxu0 %v204
  %566 = vmatpush.msra.mxu0 %v197
  %567 = vmatpush.msra.mxu0 %v190
  %568 = vmatpush.msra.mxu0 %v183
  %569 = vmatpush.msra.mxu0 %v176
  %570 = vmatpush.msra.mxu0 %v169
  %571 = vmatmul.f32.gmra.mxu0 %v18
  %v572 = vpop.f32.mrf.mxu0
  %v573 = vadd.f32 %v526, %v572
  %574 = vmatmul.f32.gmra.mxu0 %v22
  %v575 = vpop.f32.mrf.mxu0
  %v576 = vadd.f32 %v529, %v575
  %577 = vmatmul.f32.gmra.mxu0 %v26
  %v578 = vpop.f32.mrf.mxu0
  %v579 = vadd.f32 %v532, %v578
  %580 = vmatmul.f32.gmra.mxu0 %v30
  %v581 = vpop.f32.mrf.mxu0
  %v582 = vadd.f32 %v535, %v581
  %583 = vmatmul.f32.gmra.mxu0 %v34
  %v584 = vpop.f32.mrf.mxu0
  %v585 = vadd.f32 %v538, %v584
  %586 = vmatmul.f32.gmra.mxu0 %v38
  %v587 = vpop.f32.mrf.mxu0
  %v588 = vadd.f32 %v541, %v587
  %589 = vmatmul.f32.gmra.mxu0 %v42
  %v590 = vpop.f32.mrf.mxu0
  %v591 = vadd.f32 %v544, %v590
  %592 = vmatmul.f32.gmra.mxu0 %v46
  %v593 = vpop.f32.mrf.mxu0
  %v594 = vadd.f32 %v547, %v593
  %595 = vmatmul.f32.gmra.mxu0 %v50
  %v596 = vpop.f32.mrf.mxu0
  %v597 = vadd.f32 %v550, %v596
  %598 = vmatmul.f32.gmra.mxu0 %v54
  %v599 = vpop.f32.mrf.mxu0
  %v600 = vadd.f32 %v553, %v599
  %601 = vdwg.mxu0
  %602 = vmatpush.msra.mxu0 %v386
  %603 = vmatpush.msra.mxu0 %v379
  %604 = vmatpush.msra.mxu0 %v372
  %605 = vmatpush.msra.mxu0 %v365
  %606 = vmatpush.msra.mxu0 %v358
  %607 = vmatpush.msra.mxu0 %v351
  %608 = vmatpush.msra.mxu0 %v344
  %609 = vmatpush.msra.mxu0 %v337
  %610 = vmatpush.msra.mxu0 %v330
  %611 = vmatpush.msra.mxu0 %v323
  %612 = vmatpush.msra.mxu0 %v316
  %613 = vmatpush.msra.mxu0 %v309
  %614 = vmatpush.msra.mxu0 %v302
  %615 = vmatpush.msra.mxu0 %v295
  %616 = vmatpush.msra.mxu0 %v288
  %617 = vmatpush.msra.mxu0 %v281
  %618 = vmatmul.f32.gmra.mxu0 %v19
  %v619 = vpop.f32.mrf.mxu0
  %v620 = vadd.f32 %v573, %v619
  %621 = vmatmul.f32.gmra.mxu0 %v23
  %v622 = vpop.f32.mrf.mxu0
  %v623 = vadd.f32 %v576, %v622
  %624 = vmatmul.f32.gmra.mxu0 %v27
  %v625 = vpop.f32.mrf.mxu0
  %v626 = vadd.f32 %v579, %v625
  %627 = vmatmul.f32.gmra.mxu0 %v31
  %v628 = vpop.f32.mrf.mxu0
  %v629 = vadd.f32 %v582, %v628
  %630 = vmatmul.f32.gmra.mxu0 %v35
  %v631 = vpop.f32.mrf.mxu0
  %v632 = vadd.f32 %v585, %v631
  %633 = vmatmul.f32.gmra.mxu0 %v39
  %v634 = vpop.f32.mrf.mxu0
  %v635 = vadd.f32 %v588, %v634
  %636 = vmatmul.f32.gmra.mxu0 %v43
  %v637 = vpop.f32.mrf.mxu0
  %v638 = vadd.f32 %v591, %v637
  %639 = vmatmul.f32.gmra.mxu0 %v47
  %v640 = vpop.f32.mrf.mxu0
  %v641 = vadd.f32 %v594, %v640
  %642 = vmatmul.f32.gmra.mxu0 %v51
  %v643 = vpop.f32.mrf.mxu0
  %v644 = vadd.f32 %v597, %v643
  %645 = vmatmul.f32.gmra.mxu0 %v55
  %v646 = vpop.f32.mrf.mxu0
  %v647 = vadd.f32 %v600, %v646
  %648 = vdwg.mxu0
  %649 = vmatpush.msra.mxu0 0.0
  %650 = vmatpush.msra.mxu0 0.0
  %651 = vmatpush.msra.mxu0 0.0
  %652 = vmatpush.msra.mxu0 0.0
  %653 = vmatpush.msra.mxu0 %v470
  %654 = vmatpush.msra.mxu0 %v463
  %655 = vmatpush.msra.mxu0 %v456
  %656 = vmatpush.msra.mxu0 %v449
  %657 = vmatpush.msra.mxu0 %v442
  %658 = vmatpush.msra.mxu0 %v435
  %659 = vmatpush.msra.mxu0 %v428
  %660 = vmatpush.msra.mxu0 %v421
  %661 = vmatpush.msra.mxu0 %v414
  %662 = vmatpush.msra.mxu0 %v407
  %663 = vmatpush.msra.mxu0 %v400
  %664 = vmatpush.msra.mxu0 %v393
  %665 = vmatmul.f32.gmra.mxu0 %v479
  %v666 = vpop.f32.mrf.mxu0
  %v667 = vadd.f32 %v620, %v666
  %668 = vmatmul.f32.gmra.mxu0 %v482
  %v669 = vpop.f32.mrf.mxu0
  %v670 = vadd.f32 %v623, %v669
  %671 = vmatmul.f32.gmra.mxu0 %v485
  %v672 = vpop.f32.mrf.mxu0
  %v673 = vadd.f32 %v626, %v672
  %674 = vmatmul.f32.gmra.mxu0 %v488
  %v675 = vpop.f32.mrf.mxu0
  %v676 = vadd.f32 %v629, %v675
  %677 = vmatmul.f32.gmra.mxu0 %v491
  %v678 = vpop.f32.mrf.mxu0
  %v679 = vadd.f32 %v632, %v678
  %680 = vmatmul.f32.gmra.mxu0 %v494
  %v681 = vpop.f32.mrf.mxu0
  %v682 = vadd.f32 %v635, %v681
  %683 = vmatmul.f32.gmra.mxu0 %v497
  %v684 = vpop.f32.mrf.mxu0
  %v685 = vadd.f32 %v638, %v684
  %686 = vmatmul.f32.gmra.mxu0 %v500
  %v687 = vpop.f32.mrf.mxu0
  %v688 = vadd.f32 %v641, %v687
  %689 = vmatmul.f32.gmra.mxu0 %v503
  %v690 = vpop.f32.mrf.mxu0
  %v691 = vadd.f32 %v644, %v690
  %692 = vmatmul.f32.gmra.mxu0 %v506
  %v693 = vpop.f32.mrf.mxu0
  %v694 = vadd.f32 %v647, %v693
  %695 = vdwg.mxu0
  %696 = vmatpush.msra.mxu0 %v163
  %697 = vmatpush.msra.mxu0 %v156
  %698 = vmatpush.msra.mxu0 %v149
  %699 = vmatpush.msra.mxu0 %v142
  %700 = vmatpush.msra.mxu0 %v135
  %701 = vmatpush.msra.mxu0 %v128
  %702 = vmatpush.msra.mxu0 %v121
  %703 = vmatpush.msra.mxu0 %v114
  %704 = vmatpush.msra.mxu0 %v107
  %705 = vmatpush.msra.mxu0 %v100
  %706 = vmatpush.msra.mxu0 %v93
  %707 = vmatpush.msra.mxu0 %v86
  %708 = vmatpush.msra.mxu0 %v79
  %709 = vmatpush.msra.mxu0 %v72
  %710 = vmatpush.msra.mxu0 %v65
  %711 = vmatpush.msra.mxu0 %v58
  %712 = vmatmul.f32.gmra.mxu0 %v17
  %v713 = vpop.f32.mrf.mxu0
  %v714 = vadd.f32 0.0, %v713
  %715 = vmatmul.f32.gmra.mxu0 %v21
  %v716 = vpop.f32.mrf.mxu0
  %v717 = vadd.f32 0.0, %v716
  %718 = vmatmul.f32.gmra.mxu0 %v25
  %v719 = vpop.f32.mrf.mxu0
  %v720 = vadd.f32 0.0, %v719
  %721 = vmatmul.f32.gmra.mxu0 %v29
  %v722 = vpop.f32.mrf.mxu0
  %v723 = vadd.f32 0.0, %v722
  %724 = vmatmul.f32.gmra.mxu0 %v33
  %v725 = vpop.f32.mrf.mxu0
  %v726 = vadd.f32 0.0, %v725
  %727 = vmatmul.f32.gmra.mxu0 %v37
  %v728 = vpop.f32.mrf.mxu0
  %v729 = vadd.f32 0.0, %v728
  %730 = vmatmul.f32.gmra.mxu0 %v41
  %v731 = vpop.f32.mrf.mxu0
  %v732 = vadd.f32 0.0, %v731
  %733 = vmatmul.f32.gmra.mxu0 %v45
  %v734 = vpop.f32.mrf.mxu0
  %v735 = vadd.f32 0.0, %v734
  %736 = vmatmul.f32.gmra.mxu0 %v49
  %v737 = vpop.f32.mrf.mxu0
  %v738 = vadd.f32 0.0, %v737
  %739 = vmatmul.f32.gmra.mxu0 %v53
  %v740 = vpop.f32.mrf.mxu0
  %v741 = vadd.f32 0.0, %v740
  %742 = vdwg.mxu0
  %743 = vmatpush.msra.mxu0 %v275
  %744 = vmatpush.msra.mxu0 %v268
  %745 = vmatpush.msra.mxu0 %v261
  %746 = vmatpush.msra.mxu0 %v254
  %747 = vmatpush.msra.mxu0 %v247
  %748 = vmatpush.msra.mxu0 %v240
  %749 = vmatpush.msra.mxu0 %v233
  %750 = vmatpush.msra.mxu0 %v226
  %751 = vmatpush.msra.mxu0 %v219
  %752 = vmatpush.msra.mxu0 %v212
  %753 = vmatpush.msra.mxu0 %v205
  %754 = vmatpush.msra.mxu0 %v198
  %755 = vmatpush.msra.mxu0 %v191
  %756 = vmatpush.msra.mxu0 %v184
  %757 = vmatpush.msra.mxu0 %v177
  %758 = vmatpush.msra.mxu0 %v170
  %759 = vmatmul.f32.gmra.mxu0 %v18
  %v760 = vpop.f32.mrf.mxu0
  %v761 = vadd.f32 %v714, %v760
  %762 = vmatmul.f32.gmra.mxu0 %v22
  %v763 = vpop.f32.mrf.mxu0
  %v764 = vadd.f32 %v717, %v763
  %765 = vmatmul.f32.gmra.mxu0 %v26
  %v766 = vpop.f32.mrf.mxu0
  %v767 = vadd.f32 %v720, %v766
  %768 = vmatmul.f32.gmra.mxu0 %v30
  %v769 = vpop.f32.mrf.mxu0
  %v770 = vadd.f32 %v723, %v769
  %771 = vmatmul.f32.gmra.mxu0 %v34
  %v772 = vpop.f32.mrf.mxu0
  %v773 = vadd.f32 %v726, %v772
  %774 = vmatmul.f32.gmra.mxu0 %v38
  %v775 = vpop.f32.mrf.mxu0
  %v776 = vadd.f32 %v729, %v775
  %777 = vmatmul.f32.gmra.mxu0 %v42
  %v778 = vpop.f32.mrf.mxu0
  %v779 = vadd.f32 %v732, %v778
  %780 = vmatmul.f32.gmra.mxu0 %v46
  %v781 = vpop.f32.mrf.mxu0
  %v782 = vadd.f32 %v735, %v781
  %783 = vmatmul.f32.gmra.mxu0 %v50
  %v784 = vpop.f32.mrf.mxu0
  %v785 = vadd.f32 %v738, %v784
  %786 = vmatmul.f32.gmra.mxu0 %v54
  %v787 = vpop.f32.mrf.mxu0
  %v788 = vadd.f32 %v741, %v787
  %789 = vdwg.mxu0
  %790 = vmatpush.msra.mxu0 %v387
  %791 = vmatpush.msra.mxu0 %v380
  %792 = vmatpush.msra.mxu0 %v373
  %793 = vmatpush.msra.mxu0 %v366
  %794 = vmatpush.msra.mxu0 %v359
  %795 = vmatpush.msra.mxu0 %v352
  %796 = vmatpush.msra.mxu0 %v345
  %797 = vmatpush.msra.mxu0 %v338
  %798 = vmatpush.msra.mxu0 %v331
  %799 = vmatpush.msra.mxu0 %v324
  %800 = vmatpush.msra.mxu0 %v317
  %801 = vmatpush.msra.mxu0 %v310
  %802 = vmatpush.msra.mxu0 %v303
  %803 = vmatpush.msra.mxu0 %v296
  %804 = vmatpush.msra.mxu0 %v289
  %805 = vmatpush.msra.mxu0 %v282
  %806 = vmatmul.f32.gmra.mxu0 %v19
  %v807 = vpop.f32.mrf.mxu0
  %v808 = vadd.f32 %v761, %v807
  %809 = vmatmul.f32.gmra.mxu0 %v23
  %v810 = vpop.f32.mrf.mxu0
  %v811 = vadd.f32 %v764, %v810
  %812 = vmatmul.f32.gmra.mxu0 %v27
  %v813 = vpop.f32.mrf.mxu0
  %v814 = vadd.f32 %v767, %v813
  %815 = vmatmul.f32.gmra.mxu0 %v31
  %v816 = vpop.f32.mrf.mxu0
  %v817 = vadd.f32 %v770, %v816
  %818 = vmatmul.f32.gmra.mxu0 %v35
  %v819 = vpop.f32.mrf.mxu0
  %v820 = vadd.f32 %v773, %v819
  %821 = vmatmul.f32.gmra.mxu0 %v39
  %v822 = vpop.f32.mrf.mxu0
  %v823 = vadd.f32 %v776, %v822
  %824 = vmatmul.f32.gmra.mxu0 %v43
  %v825 = vpop.f32.mrf.mxu0
  %v826 = vadd.f32 %v779, %v825
  %827 = vmatmul.f32.gmra.mxu0 %v47
  %v828 = vpop.f32.mrf.mxu0
  %v829 = vadd.f32 %v782, %v828
  %830 = vmatmul.f32.gmra.mxu0 %v51
  %v831 = vpop.f32.mrf.mxu0
  %v832 = vadd.f32 %v785, %v831
  %833 = vmatmul.f32.gmra.mxu0 %v55
  %v834 = vpop.f32.mrf.mxu0
  %v835 = vadd.f32 %v788, %v834
  %836 = vdwg.mxu0
  %837 = vmatpush.msra.mxu0 0.0
  %838 = vmatpush.msra.mxu0 0.0
  %839 = vmatpush.msra.mxu0 0.0
  %840 = vmatpush.msra.mxu0 0.0
  %841 = vmatpush.msra.mxu0 %v471
  %842 = vmatpush.msra.mxu0 %v464
  %843 = vmatpush.msra.mxu0 %v457
  %844 = vmatpush.msra.mxu0 %v450
  %845 = vmatpush.msra.mxu0 %v443
  %846 = vmatpush.msra.mxu0 %v436
  %847 = vmatpush.msra.mxu0 %v429
  %848 = vmatpush.msra.mxu0 %v422
  %849 = vmatpush.msra.mxu0 %v415
  %850 = vmatpush.msra.mxu0 %v408
  %851 = vmatpush.msra.mxu0 %v401
  %852 = vmatpush.msra.mxu0 %v394
  %853 = vmatmul.f32.gmra.mxu0 %v479
  %v854 = vpop.f32.mrf.mxu0
  %v855 = vadd.f32 %v808, %v854
  %856 = vmatmul.f32.gmra.mxu0 %v482
  %v857 = vpop.f32.mrf.mxu0
  %v858 = vadd.f32 %v811, %v857
  %859 = vmatmul.f32.gmra.mxu0 %v485
  %v860 = vpop.f32.mrf.mxu0
  %v861 = vadd.f32 %v814, %v860
  %862 = vmatmul.f32.gmra.mxu0 %v488
  %v863 = vpop.f32.mrf.mxu0
  %v864 = vadd.f32 %v817, %v863
  %865 = vmatmul.f32.gmra.mxu0 %v491
  %v866 = vpop.f32.mrf.mxu0
  %v867 = vadd.f32 %v820, %v866
  %868 = vmatmul.f32.gmra.mxu0 %v494
  %v869 = vpop.f32.mrf.mxu0
  %v870 = vadd.f32 %v823, %v869
  %871 = vmatmul.f32.gmra.mxu0 %v497
  %v872 = vpop.f32.mrf.mxu0
  %v873 = vadd.f32 %v826, %v872
  %874 = vmatmul.f32.gmra.mxu0 %v500
  %v875 = vpop.f32.mrf.mxu0
  %v876 = vadd.f32 %v829, %v875
  %877 = vmatmul.f32.gmra.mxu0 %v503
  %v878 = vpop.f32.mrf.mxu0
  %v879 = vadd.f32 %v832, %v878
  %880 = vmatmul.f32.gmra.mxu0 %v506
  %v881 = vpop.f32.mrf.mxu0
  %v882 = vadd.f32 %v835, %v881
  %883 = vdwg.mxu0
  %884 = vmatpush.msra.mxu0 %v164
  %885 = vmatpush.msra.mxu0 %v157
  %886 = vmatpush.msra.mxu0 %v150
  %887 = vmatpush.msra.mxu0 %v143
  %888 = vmatpush.msra.mxu0 %v136
  %889 = vmatpush.msra.mxu0 %v129
  %890 = vmatpush.msra.mxu0 %v122
  %891 = vmatpush.msra.mxu0 %v115
  %892 = vmatpush.msra.mxu0 %v108
  %893 = vmatpush.msra.mxu0 %v101
  %894 = vmatpush.msra.mxu0 %v94
  %895 = vmatpush.msra.mxu0 %v87
  %896 = vmatpush.msra.mxu0 %v80
  %897 = vmatpush.msra.mxu0 %v73
  %898 = vmatpush.msra.mxu0 %v66
  %899 = vmatpush.msra.mxu0 %v59
  %900 = vmatmul.f32.gmra.mxu0 %v17
  %v901 = vpop.f32.mrf.mxu0
  %v902 = vadd.f32 0.0, %v901
  %903 = vmatmul.f32.gmra.mxu0 %v21
  %v904 = vpop.f32.mrf.mxu0
  %v905 = vadd.f32 0.0, %v904
  %906 = vmatmul.f32.gmra.mxu0 %v25
  %v907 = vpop.f32.mrf.mxu0
  %v908 = vadd.f32 0.0, %v907
  %909 = vmatmul.f32.gmra.mxu0 %v29
  %v910 = vpop.f32.mrf.mxu0
  %v911 = vadd.f32 0.0, %v910
  %912 = vmatmul.f32.gmra.mxu0 %v33
  %v913 = vpop.f32.mrf.mxu0
  %v914 = vadd.f32 0.0, %v913
  %915 = vmatmul.f32.gmra.mxu0 %v37
  %v916 = vpop.f32.mrf.mxu0
  %v917 = vadd.f32 0.0, %v916
  %918 = vmatmul.f32.gmra.mxu0 %v41
  %v919 = vpop.f32.mrf.mxu0
  %v920 = vadd.f32 0.0, %v919
  %921 = vmatmul.f32.gmra.mxu0 %v45
  %v922 = vpop.f32.mrf.mxu0
  %v923 = vadd.f32 0.0, %v922
  %924 = vmatmul.f32.gmra.mxu0 %v49
  %v925 = vpop.f32.mrf.mxu0
  %v926 = vadd.f32 0.0, %v925
  %927 = vmatmul.f32.gmra.mxu0 %v53
  %v928 = vpop.f32.mrf.mxu0
  %v929 = vadd.f32 0.0, %v928
  %930 = vdwg.mxu0
  %931 = vmatpush.msra.mxu0 %v276
  %932 = vmatpush.msra.mxu0 %v269
  %933 = vmatpush.msra.mxu0 %v262
  %934 = vmatpush.msra.mxu0 %v255
  %935 = vmatpush.msra.mxu0 %v248
  %936 = vmatpush.msra.mxu0 %v241
  %937 = vmatpush.msra.mxu0 %v234
  %938 = vmatpush.msra.mxu0 %v227
  %939 = vmatpush.msra.mxu0 %v220
  %940 = vmatpush.msra.mxu0 %v213
  %941 = vmatpush.msra.mxu0 %v206
  %942 = vmatpush.msra.mxu0 %v199
  %943 = vmatpush.msra.mxu0 %v192
  %944 = vmatpush.msra.mxu0 %v185
  %945 = vmatpush.msra.mxu0 %v178
  %946 = vmatpush.msra.mxu0 %v171
  %947 = vmatmul.f32.gmra.mxu0 %v18
  %v948 = vpop.f32.mrf.mxu0
  %v949 = vadd.f32 %v902, %v948
  %950 = vmatmul.f32.gmra.mxu0 %v22
  %v951 = vpop.f32.mrf.mxu0
  %v952 = vadd.f32 %v905, %v951
  %953 = vmatmul.f32.gmra.mxu0 %v26
  %v954 = vpop.f32.mrf.mxu0
  %v955 = vadd.f32 %v908, %v954
  %956 = vmatmul.f32.gmra.mxu0 %v30
  %v957 = vpop.f32.mrf.mxu0
  %v958 = vadd.f32 %v911, %v957
  %959 = vmatmul.f32.gmra.mxu0 %v34
  %v960 = vpop.f32.mrf.mxu0
  %v961 = vadd.f32 %v914, %v960
  %962 = vmatmul.f32.gmra.mxu0 %v38
  %v963 = vpop.f32.mrf.mxu0
  %v964 = vadd.f32 %v917, %v963
  %965 = vmatmul.f32.gmra.mxu0 %v42
  %v966 = vpop.f32.mrf.mxu0
  %v967 = vadd.f32 %v920, %v966
  %968 = vmatmul.f32.gmra.mxu0 %v46
  %v969 = vpop.f32.mrf.mxu0
  %v970 = vadd.f32 %v923, %v969
  %971 = vmatmul.f32.gmra.mxu0 %v50
  %v972 = vpop.f32.mrf.mxu0
  %v973 = vadd.f32 %v926, %v972
  %974 = vmatmul.f32.gmra.mxu0 %v54
  %v975 = vpop.f32.mrf.mxu0
  %v976 = vadd.f32 %v929, %v975
  %977 = vdwg.mxu0
  %978 = vmatpush.msra.mxu0 %v388
  %979 = vmatpush.msra.mxu0 %v381
  %980 = vmatpush.msra.mxu0 %v374
  %981 = vmatpush.msra.mxu0 %v367
  %982 = vmatpush.msra.mxu0 %v360
  %983 = vmatpush.msra.mxu0 %v353
  %984 = vmatpush.msra.mxu0 %v346
  %985 = vmatpush.msra.mxu0 %v339
  %986 = vmatpush.msra.mxu0 %v332
  %987 = vmatpush.msra.mxu0 %v325
  %988 = vmatpush.msra.mxu0 %v318
  %989 = vmatpush.msra.mxu0 %v311
  %990 = vmatpush.msra.mxu0 %v304
  %991 = vmatpush.msra.mxu0 %v297
  %992 = vmatpush.msra.mxu0 %v290
  %993 = vmatpush.msra.mxu0 %v283
  %994 = vmatmul.f32.gmra.mxu0 %v19
  %v995 = vpop.f32.mrf.mxu0
  %v996 = vadd.f32 %v949, %v995
  %997 = vmatmul.f32.gmra.mxu0 %v23
  %v998 = vpop.f32.mrf.mxu0
  %v999 = vadd.f32 %v952, %v998
  %1000 = vmatmul.f32.gmra.mxu0 %v27
  %v1001 = vpop.f32.mrf.mxu0
  %v1002 = vadd.f32 %v955, %v1001
  %1003 = vmatmul.f32.gmra.mxu0 %v31
  %v1004 = vpop.f32.mrf.mxu0
  %v1005 = vadd.f32 %v958, %v1004
  %1006 = vmatmul.f32.gmra.mxu0 %v35
  %v1007 = vpop.f32.mrf.mxu0
  %v1008 = vadd.f32 %v961, %v1007
  %1009 = vmatmul.f32.gmra.mxu0 %v39
  %v1010 = vpop.f32.mrf.mxu0
  %v1011 = vadd.f32 %v964, %v1010
  %1012 = vmatmul.f32.gmra.mxu0 %v43
  %v1013 = vpop.f32.mrf.mxu0
  %v1014 = vadd.f32 %v967, %v1013
  %1015 = vmatmul.f32.gmra.mxu0 %v47
  %v1016 = vpop.f32.mrf.mxu0
  %v1017 = vadd.f32 %v970, %v1016
  %1018 = vmatmul.f32.gmra.mxu0 %v51
  %v1019 = vpop.f32.mrf.mxu0
  %v1020 = vadd.f32 %v973, %v1019
  %1021 = vmatmul.f32.gmra.mxu0 %v55
  %v1022 = vpop.f32.mrf.mxu0
  %v1023 = vadd.f32 %v976, %v1022
  %1024 = vdwg.mxu0
  %1025 = vmatpush.msra.mxu0 0.0
  %1026 = vmatpush.msra.mxu0 0.0
  %1027 = vmatpush.msra.mxu0 0.0
  %1028 = vmatpush.msra.mxu0 0.0
  %1029 = vmatpush.msra.mxu0 %v472
  %1030 = vmatpush.msra.mxu0 %v465
  %1031 = vmatpush.msra.mxu0 %v458
  %1032 = vmatpush.msra.mxu0 %v451
  %1033 = vmatpush.msra.mxu0 %v444
  %1034 = vmatpush.msra.mxu0 %v437
  %1035 = vmatpush.msra.mxu0 %v430
  %1036 = vmatpush.msra.mxu0 %v423
  %1037 = vmatpush.msra.mxu0 %v416
  %1038 = vmatpush.msra.mxu0 %v409
  %1039 = vmatpush.msra.mxu0 %v402
  %1040 = vmatpush.msra.mxu0 %v395
  %1041 = vmatmul.f32.gmra.mxu0 %v479
  %v1042 = vpop.f32.mrf.mxu0
  %v1043 = vadd.f32 %v996, %v1042
  %1044 = vmatmul.f32.gmra.mxu0 %v482
  %v1045 = vpop.f32.mrf.mxu0
  %v1046 = vadd.f32 %v999, %v1045
  %1047 = vmatmul.f32.gmra.mxu0 %v485
  %v1048 = vpop.f32.mrf.mxu0
  %v1049 = vadd.f32 %v1002, %v1048
  %1050 = vmatmul.f32.gmra.mxu0 %v488
  %v1051 = vpop.f32.mrf.mxu0
  %v1052 = vadd.f32 %v1005, %v1051
  %1053 = vmatmul.f32.gmra.mxu0 %v491
  %v1054 = vpop.f32.mrf.mxu0
  %v1055 = vadd.f32 %v1008, %v1054
  %1056 = vmatmul.f32.gmra.mxu0 %v494
  %v1057 = vpop.f32.mrf.mxu0
  %v1058 = vadd.f32 %v1011, %v1057
  %1059 = vmatmul.f32.gmra.mxu0 %v497
  %v1060 = vpop.f32.mrf.mxu0
  %v1061 = vadd.f32 %v1014, %v1060
  %1062 = vmatmul.f32.gmra.mxu0 %v500
  %v1063 = vpop.f32.mrf.mxu0
  %v1064 = vadd.f32 %v1017, %v1063
  %1065 = vmatmul.f32.gmra.mxu0 %v503
  %v1066 = vpop.f32.mrf.mxu0
  %v1067 = vadd.f32 %v1020, %v1066
  %1068 = vmatmul.f32.gmra.mxu0 %v506
  %v1069 = vpop.f32.mrf.mxu0
  %v1070 = vadd.f32 %v1023, %v1069
  %1071 = vdwg.mxu0
  %1072 = vmatpush.msra.mxu0 %v165
  %1073 = vmatpush.msra.mxu0 %v158
  %1074 = vmatpush.msra.mxu0 %v151
  %1075 = vmatpush.msra.mxu0 %v144
  %1076 = vmatpush.msra.mxu0 %v137
  %1077 = vmatpush.msra.mxu0 %v130
  %1078 = vmatpush.msra.mxu0 %v123
  %1079 = vmatpush.msra.mxu0 %v116
  %1080 = vmatpush.msra.mxu0 %v109
  %1081 = vmatpush.msra.mxu0 %v102
  %1082 = vmatpush.msra.mxu0 %v95
  %1083 = vmatpush.msra.mxu0 %v88
  %1084 = vmatpush.msra.mxu0 %v81
  %1085 = vmatpush.msra.mxu0 %v74
  %1086 = vmatpush.msra.mxu0 %v67
  %1087 = vmatpush.msra.mxu0 %v60
  %1088 = vmatmul.f32.gmra.mxu0 %v17
  %v1089 = vpop.f32.mrf.mxu0
  %v1090 = vadd.f32 0.0, %v1089
  %1091 = vmatmul.f32.gmra.mxu0 %v21
  %v1092 = vpop.f32.mrf.mxu0
  %v1093 = vadd.f32 0.0, %v1092
  %1094 = vmatmul.f32.gmra.mxu0 %v25
  %v1095 = vpop.f32.mrf.mxu0
  %v1096 = vadd.f32 0.0, %v1095
  %1097 = vmatmul.f32.gmra.mxu0 %v29
  %v1098 = vpop.f32.mrf.mxu0
  %v1099 = vadd.f32 0.0, %v1098
  %1100 = vmatmul.f32.gmra.mxu0 %v33
  %v1101 = vpop.f32.mrf.mxu0
  %v1102 = vadd.f32 0.0, %v1101
  %1103 = vmatmul.f32.gmra.mxu0 %v37
  %v1104 = vpop.f32.mrf.mxu0
  %v1105 = vadd.f32 0.0, %v1104
  %1106 = vmatmul.f32.gmra.mxu0 %v41
  %v1107 = vpop.f32.mrf.mxu0
  %v1108 = vadd.f32 0.0, %v1107
  %1109 = vmatmul.f32.gmra.mxu0 %v45
  %v1110 = vpop.f32.mrf.mxu0
  %v1111 = vadd.f32 0.0, %v1110
  %1112 = vmatmul.f32.gmra.mxu0 %v49
  %v1113 = vpop.f32.mrf.mxu0
  %v1114 = vadd.f32 0.0, %v1113
  %1115 = vmatmul.f32.gmra.mxu0 %v53
  %v1116 = vpop.f32.mrf.mxu0
  %v1117 = vadd.f32 0.0, %v1116
  %1118 = vdwg.mxu0
  %1119 = vmatpush.msra.mxu0 %v277
  %1120 = vmatpush.msra.mxu0 %v270
  %1121 = vmatpush.msra.mxu0 %v263
  %1122 = vmatpush.msra.mxu0 %v256
  %1123 = vmatpush.msra.mxu0 %v249
  %1124 = vmatpush.msra.mxu0 %v242
  %1125 = vmatpush.msra.mxu0 %v235
  %1126 = vmatpush.msra.mxu0 %v228
  %1127 = vmatpush.msra.mxu0 %v221
  %1128 = vmatpush.msra.mxu0 %v214
  %1129 = vmatpush.msra.mxu0 %v207
  %1130 = vmatpush.msra.mxu0 %v200
  %1131 = vmatpush.msra.mxu0 %v193
  %1132 = vmatpush.msra.mxu0 %v186
  %1133 = vmatpush.msra.mxu0 %v179
  %1134 = vmatpush.msra.mxu0 %v172
  %1135 = vmatmul.f32.gmra.mxu0 %v18
  %v1136 = vpop.f32.mrf.mxu0
  %v1137 = vadd.f32 %v1090, %v1136
  %1138 = vmatmul.f32.gmra.mxu0 %v22
  %v1139 = vpop.f32.mrf.mxu0
  %v1140 = vadd.f32 %v1093, %v1139
  %1141 = vmatmul.f32.gmra.mxu0 %v26
  %v1142 = vpop.f32.mrf.mxu0
  %v1143 = vadd.f32 %v1096, %v1142
  %1144 = vmatmul.f32.gmra.mxu0 %v30
  %v1145 = vpop.f32.mrf.mxu0
  %v1146 = vadd.f32 %v1099, %v1145
  %1147 = vmatmul.f32.gmra.mxu0 %v34
  %v1148 = vpop.f32.mrf.mxu0
  %v1149 = vadd.f32 %v1102, %v1148
  %1150 = vmatmul.f32.gmra.mxu0 %v38
  %v1151 = vpop.f32.mrf.mxu0
  %v1152 = vadd.f32 %v1105, %v1151
  %1153 = vmatmul.f32.gmra.mxu0 %v42
  %v1154 = vpop.f32.mrf.mxu0
  %v1155 = vadd.f32 %v1108, %v1154
  %1156 = vmatmul.f32.gmra.mxu0 %v46
  %v1157 = vpop.f32.mrf.mxu0
  %v1158 = vadd.f32 %v1111, %v1157
  %1159 = vmatmul.f32.gmra.mxu0 %v50
  %v1160 = vpop.f32.mrf.mxu0
  %v1161 = vadd.f32 %v1114, %v1160
  %1162 = vmatmul.f32.gmra.mxu0 %v54
  %v1163 = vpop.f32.mrf.mxu0
  %v1164 = vadd.f32 %v1117, %v1163
  %1165 = vdwg.mxu0
  %1166 = vmatpush.msra.mxu0 %v389
  %1167 = vmatpush.msra.mxu0 %v382
  %1168 = vmatpush.msra.mxu0 %v375
  %1169 = vmatpush.msra.mxu0 %v368
  %1170 = vmatpush.msra.mxu0 %v361
  %1171 = vmatpush.msra.mxu0 %v354
  %1172 = vmatpush.msra.mxu0 %v347
  %1173 = vmatpush.msra.mxu0 %v340
  %1174 = vmatpush.msra.mxu0 %v333
  %1175 = vmatpush.msra.mxu0 %v326
  %1176 = vmatpush.msra.mxu0 %v319
  %1177 = vmatpush.msra.mxu0 %v312
  %1178 = vmatpush.msra.mxu0 %v305
  %1179 = vmatpush.msra.mxu0 %v298
  %1180 = vmatpush.msra.mxu0 %v291
  %1181 = vmatpush.msra.mxu0 %v284
  %1182 = vmatmul.f32.gmra.mxu0 %v19
  %v1183 = vpop.f32.mrf.mxu0
  %v1184 = vadd.f32 %v1137, %v1183
  %1185 = vmatmul.f32.gmra.mxu0 %v23
  %v1186 = vpop.f32.mrf.mxu0
  %v1187 = vadd.f32 %v1140, %v1186
  %1188 = vmatmul.f32.gmra.mxu0 %v27
  %v1189 = vpop.f32.mrf.mxu0
  %v1190 = vadd.f32 %v1143, %v1189
  %1191 = vmatmul.f32.gmra.mxu0 %v31
  %v1192 = vpop.f32.mrf.mxu0
  %v1193 = vadd.f32 %v1146, %v1192
  %1194 = vmatmul.f32.gmra.mxu0 %v35
  %v1195 = vpop.f32.mrf.mxu0
  %v1196 = vadd.f32 %v1149, %v1195
  %1197 = vmatmul.f32.gmra.mxu0 %v39
  %v1198 = vpop.f32.mrf.mxu0
  %v1199 = vadd.f32 %v1152, %v1198
  %1200 = vmatmul.f32.gmra.mxu0 %v43
  %v1201 = vpop.f32.mrf.mxu0
  %v1202 = vadd.f32 %v1155, %v1201
  %1203 = vmatmul.f32.gmra.mxu0 %v47
  %v1204 = vpop.f32.mrf.mxu0
  %v1205 = vadd.f32 %v1158, %v1204
  %1206 = vmatmul.f32.gmra.mxu0 %v51
  %v1207 = vpop.f32.mrf.mxu0
  %v1208 = vadd.f32 %v1161, %v1207
  %1209 = vmatmul.f32.gmra.mxu0 %v55
  %v1210 = vpop.f32.mrf.mxu0
  %v1211 = vadd.f32 %v1164, %v1210
  %1212 = vdwg.mxu0
  %1213 = vmatpush.msra.mxu0 0.0
  %1214 = vmatpush.msra.mxu0 0.0
  %1215 = vmatpush.msra.mxu0 0.0
  %1216 = vmatpush.msra.mxu0 0.0
  %1217 = vmatpush.msra.mxu0 %v473
  %1218 = vmatpush.msra.mxu0 %v466
  %1219 = vmatpush.msra.mxu0 %v459
  %1220 = vmatpush.msra.mxu0 %v452
  %1221 = vmatpush.msra.mxu0 %v445
  %1222 = vmatpush.msra.mxu0 %v438
  %1223 = vmatpush.msra.mxu0 %v431
  %1224 = vmatpush.msra.mxu0 %v424
  %1225 = vmatpush.msra.mxu0 %v417
  %1226 = vmatpush.msra.mxu0 %v410
  %1227 = vmatpush.msra.mxu0 %v403
  %1228 = vmatpush.msra.mxu0 %v396
  %1229 = vmatmul.f32.gmra.mxu0 %v479
  %v1230 = vpop.f32.mrf.mxu0
  %v1231 = vadd.f32 %v1184, %v1230
  %1232 = vmatmul.f32.gmra.mxu0 %v482
  %v1233 = vpop.f32.mrf.mxu0
  %v1234 = vadd.f32 %v1187, %v1233
  %1235 = vmatmul.f32.gmra.mxu0 %v485
  %v1236 = vpop.f32.mrf.mxu0
  %v1237 = vadd.f32 %v1190, %v1236
  %1238 = vmatmul.f32.gmra.mxu0 %v488
  %v1239 = vpop.f32.mrf.mxu0
  %v1240 = vadd.f32 %v1193, %v1239
  %1241 = vmatmul.f32.gmra.mxu0 %v491
  %v1242 = vpop.f32.mrf.mxu0
  %v1243 = vadd.f32 %v1196, %v1242
  %1244 = vmatmul.f32.gmra.mxu0 %v494
  %v1245 = vpop.f32.mrf.mxu0
  %v1246 = vadd.f32 %v1199, %v1245
  %1247 = vmatmul.f32.gmra.mxu0 %v497
  %v1248 = vpop.f32.mrf.mxu0
  %v1249 = vadd.f32 %v1202, %v1248
  %1250 = vmatmul.f32.gmra.mxu0 %v500
  %v1251 = vpop.f32.mrf.mxu0
  %v1252 = vadd.f32 %v1205, %v1251
  %1253 = vmatmul.f32.gmra.mxu0 %v503
  %v1254 = vpop.f32.mrf.mxu0
  %v1255 = vadd.f32 %v1208, %v1254
  %1256 = vmatmul.f32.gmra.mxu0 %v506
  %v1257 = vpop.f32.mrf.mxu0
  %v1258 = vadd.f32 %v1211, %v1257
  %1259 = vdwg.mxu0
  %1260 = vmatpush.msra.mxu0 %v166
  %1261 = vmatpush.msra.mxu0 %v159
  %1262 = vmatpush.msra.mxu0 %v152
  %1263 = vmatpush.msra.mxu0 %v145
  %1264 = vmatpush.msra.mxu0 %v138
  %1265 = vmatpush.msra.mxu0 %v131
  %1266 = vmatpush.msra.mxu0 %v124
  %1267 = vmatpush.msra.mxu0 %v117
  %1268 = vmatpush.msra.mxu0 %v110
  %1269 = vmatpush.msra.mxu0 %v103
  %1270 = vmatpush.msra.mxu0 %v96
  %1271 = vmatpush.msra.mxu0 %v89
  %1272 = vmatpush.msra.mxu0 %v82
  %1273 = vmatpush.msra.mxu0 %v75
  %1274 = vmatpush.msra.mxu0 %v68
  %1275 = vmatpush.msra.mxu0 %v61
  %1276 = vmatmul.f32.gmra.mxu0 %v17
  %v1277 = vpop.f32.mrf.mxu0
  %v1278 = vadd.f32 0.0, %v1277
  %1279 = vmatmul.f32.gmra.mxu0 %v21
  %v1280 = vpop.f32.mrf.mxu0
  %v1281 = vadd.f32 0.0, %v1280
  %1282 = vmatmul.f32.gmra.mxu0 %v25
  %v1283 = vpop.f32.mrf.mxu0
  %v1284 = vadd.f32 0.0, %v1283
  %1285 = vmatmul.f32.gmra.mxu0 %v29
  %v1286 = vpop.f32.mrf.mxu0
  %v1287 = vadd.f32 0.0, %v1286
  %1288 = vmatmul.f32.gmra.mxu0 %v33
  %v1289 = vpop.f32.mrf.mxu0
  %v1290 = vadd.f32 0.0, %v1289
  %1291 = vmatmul.f32.gmra.mxu0 %v37
  %v1292 = vpop.f32.mrf.mxu0
  %v1293 = vadd.f32 0.0, %v1292
  %1294 = vmatmul.f32.gmra.mxu0 %v41
  %v1295 = vpop.f32.mrf.mxu0
  %v1296 = vadd.f32 0.0, %v1295
  %1297 = vmatmul.f32.gmra.mxu0 %v45
  %v1298 = vpop.f32.mrf.mxu0
  %v1299 = vadd.f32 0.0, %v1298
  %1300 = vmatmul.f32.gmra.mxu0 %v49
  %v1301 = vpop.f32.mrf.mxu0
  %v1302 = vadd.f32 0.0, %v1301
  %1303 = vmatmul.f32.gmra.mxu0 %v53
  %v1304 = vpop.f32.mrf.mxu0
  %v1305 = vadd.f32 0.0, %v1304
  %1306 = vdwg.mxu0
  %1307 = vmatpush.msra.mxu0 %v278
  %1308 = vmatpush.msra.mxu0 %v271
  %1309 = vmatpush.msra.mxu0 %v264
  %1310 = vmatpush.msra.mxu0 %v257
  %1311 = vmatpush.msra.mxu0 %v250
  %1312 = vmatpush.msra.mxu0 %v243
  %1313 = vmatpush.msra.mxu0 %v236
  %1314 = vmatpush.msra.mxu0 %v229
  %1315 = vmatpush.msra.mxu0 %v222
  %1316 = vmatpush.msra.mxu0 %v215
  %1317 = vmatpush.msra.mxu0 %v208
  %1318 = vmatpush.msra.mxu0 %v201
  %1319 = vmatpush.msra.mxu0 %v194
  %1320 = vmatpush.msra.mxu0 %v187
  %1321 = vmatpush.msra.mxu0 %v180
  %1322 = vmatpush.msra.mxu0 %v173
  %1323 = vmatmul.f32.gmra.mxu0 %v18
  %v1324 = vpop.f32.mrf.mxu0
  %v1325 = vadd.f32 %v1278, %v1324
  %1326 = vmatmul.f32.gmra.mxu0 %v22
  %v1327 = vpop.f32.mrf.mxu0
  %v1328 = vadd.f32 %v1281, %v1327
  %1329 = vmatmul.f32.gmra.mxu0 %v26
  %v1330 = vpop.f32.mrf.mxu0
  %v1331 = vadd.f32 %v1284, %v1330
  %1332 = vmatmul.f32.gmra.mxu0 %v30
  %v1333 = vpop.f32.mrf.mxu0
  %v1334 = vadd.f32 %v1287, %v1333
  %1335 = vmatmul.f32.gmra.mxu0 %v34
  %v1336 = vpop.f32.mrf.mxu0
  %v1337 = vadd.f32 %v1290, %v1336
  %1338 = vmatmul.f32.gmra.mxu0 %v38
  %v1339 = vpop.f32.mrf.mxu0
  %v1340 = vadd.f32 %v1293, %v1339
  %1341 = vmatmul.f32.gmra.mxu0 %v42
  %v1342 = vpop.f32.mrf.mxu0
  %v1343 = vadd.f32 %v1296, %v1342
  %1344 = vmatmul.f32.gmra.mxu0 %v46
  %v1345 = vpop.f32.mrf.mxu0
  %v1346 = vadd.f32 %v1299, %v1345
  %1347 = vmatmul.f32.gmra.mxu0 %v50
  %v1348 = vpop.f32.mrf.mxu0
  %v1349 = vadd.f32 %v1302, %v1348
  %1350 = vmatmul.f32.gmra.mxu0 %v54
  %v1351 = vpop.f32.mrf.mxu0
  %v1352 = vadd.f32 %v1305, %v1351
  %1353 = vdwg.mxu0
  %1354 = vmatpush.msra.mxu0 %v390
  %1355 = vmatpush.msra.mxu0 %v383
  %1356 = vmatpush.msra.mxu0 %v376
  %1357 = vmatpush.msra.mxu0 %v369
  %1358 = vmatpush.msra.mxu0 %v362
  %1359 = vmatpush.msra.mxu0 %v355
  %1360 = vmatpush.msra.mxu0 %v348
  %1361 = vmatpush.msra.mxu0 %v341
  %1362 = vmatpush.msra.mxu0 %v334
  %1363 = vmatpush.msra.mxu0 %v327
  %1364 = vmatpush.msra.mxu0 %v320
  %1365 = vmatpush.msra.mxu0 %v313
  %1366 = vmatpush.msra.mxu0 %v306
  %1367 = vmatpush.msra.mxu0 %v299
  %1368 = vmatpush.msra.mxu0 %v292
  %1369 = vmatpush.msra.mxu0 %v285
  %1370 = vmatmul.f32.gmra.mxu0 %v19
  %v1371 = vpop.f32.mrf.mxu0
  %v1372 = vadd.f32 %v1325, %v1371
  %1373 = vmatmul.f32.gmra.mxu0 %v23
  %v1374 = vpop.f32.mrf.mxu0
  %v1375 = vadd.f32 %v1328, %v1374
  %1376 = vmatmul.f32.gmra.mxu0 %v27
  %v1377 = vpop.f32.mrf.mxu0
  %v1378 = vadd.f32 %v1331, %v1377
  %1379 = vmatmul.f32.gmra.mxu0 %v31
  %v1380 = vpop.f32.mrf.mxu0
  %v1381 = vadd.f32 %v1334, %v1380
  %1382 = vmatmul.f32.gmra.mxu0 %v35
  %v1383 = vpop.f32.mrf.mxu0
  %v1384 = vadd.f32 %v1337, %v1383
  %1385 = vmatmul.f32.gmra.mxu0 %v39
  %v1386 = vpop.f32.mrf.mxu0
  %v1387 = vadd.f32 %v1340, %v1386
  %1388 = vmatmul.f32.gmra.mxu0 %v43
  %v1389 = vpop.f32.mrf.mxu0
  %v1390 = vadd.f32 %v1343, %v1389
  %1391 = vmatmul.f32.gmra.mxu0 %v47
  %v1392 = vpop.f32.mrf.mxu0
  %v1393 = vadd.f32 %v1346, %v1392
  %1394 = vmatmul.f32.gmra.mxu0 %v51
  %v1395 = vpop.f32.mrf.mxu0
  %v1396 = vadd.f32 %v1349, %v1395
  %1397 = vmatmul.f32.gmra.mxu0 %v55
  %v1398 = vpop.f32.mrf.mxu0
  %v1399 = vadd.f32 %v1352, %v1398
  %1400 = vdwg.mxu0
  %1401 = vmatpush.msra.mxu0 0.0
  %1402 = vmatpush.msra.mxu0 0.0
  %1403 = vmatpush.msra.mxu0 0.0
  %1404 = vmatpush.msra.mxu0 0.0
  %1405 = vmatpush.msra.mxu0 %v474
  %1406 = vmatpush.msra.mxu0 %v467
  %1407 = vmatpush.msra.mxu0 %v460
  %1408 = vmatpush.msra.mxu0 %v453
  %1409 = vmatpush.msra.mxu0 %v446
  %1410 = vmatpush.msra.mxu0 %v439
  %1411 = vmatpush.msra.mxu0 %v432
  %1412 = vmatpush.msra.mxu0 %v425
  %1413 = vmatpush.msra.mxu0 %v418
  %1414 = vmatpush.msra.mxu0 %v411
  %1415 = vmatpush.msra.mxu0 %v404
  %1416 = vmatpush.msra.mxu0 %v397
  %1417 = vmatmul.f32.gmra.mxu0 %v479
  %v1418 = vpop.f32.mrf.mxu0
  %v1419 = vadd.f32 %v1372, %v1418
  %1420 = vmatmul.f32.gmra.mxu0 %v482
  %v1421 = vpop.f32.mrf.mxu0
  %v1422 = vadd.f32 %v1375, %v1421
  %1423 = vmatmul.f32.gmra.mxu0 %v485
  %v1424 = vpop.f32.mrf.mxu0
  %v1425 = vadd.f32 %v1378, %v1424
  %1426 = vmatmul.f32.gmra.mxu0 %v488
  %v1427 = vpop.f32.mrf.mxu0
  %v1428 = vadd.f32 %v1381, %v1427
  %1429 = vmatmul.f32.gmra.mxu0 %v491
  %v1430 = vpop.f32.mrf.mxu0
  %v1431 = vadd.f32 %v1384, %v1430
  %1432 = vmatmul.f32.gmra.mxu0 %v494
  %v1433 = vpop.f32.mrf.mxu0
  %v1434 = vadd.f32 %v1387, %v1433
  %1435 = vmatmul.f32.gmra.mxu0 %v497
  %v1436 = vpop.f32.mrf.mxu0
  %v1437 = vadd.f32 %v1390, %v1436
  %1438 = vmatmul.f32.gmra.mxu0 %v500
  %v1439 = vpop.f32.mrf.mxu0
  %v1440 = vadd.f32 %v1393, %v1439
  %1441 = vmatmul.f32.gmra.mxu0 %v503
  %v1442 = vpop.f32.mrf.mxu0
  %v1443 = vadd.f32 %v1396, %v1442
  %1444 = vmatmul.f32.gmra.mxu0 %v506
  %v1445 = vpop.f32.mrf.mxu0
  %v1446 = vadd.f32 %v1399, %v1445
  %1447 = vdwg.mxu0
  %1448 = vmatpush.msra.mxu0 %v167
  %1449 = vmatpush.msra.mxu0 %v160
  %1450 = vmatpush.msra.mxu0 %v153
  %1451 = vmatpush.msra.mxu0 %v146
  %1452 = vmatpush.msra.mxu0 %v139
  %1453 = vmatpush.msra.mxu0 %v132
  %1454 = vmatpush.msra.mxu0 %v125
  %1455 = vmatpush.msra.mxu0 %v118
  %1456 = vmatpush.msra.mxu0 %v111
  %1457 = vmatpush.msra.mxu0 %v104
  %1458 = vmatpush.msra.mxu0 %v97
  %1459 = vmatpush.msra.mxu0 %v90
  %1460 = vmatpush.msra.mxu0 %v83
  %1461 = vmatpush.msra.mxu0 %v76
  %1462 = vmatpush.msra.mxu0 %v69
  %1463 = vmatpush.msra.mxu0 %v62
  %1464 = vmatmul.f32.gmra.mxu0 %v17
  %v1465 = vpop.f32.mrf.mxu0
  %v1466 = vadd.f32 0.0, %v1465
  %1467 = vmatmul.f32.gmra.mxu0 %v21
  %v1468 = vpop.f32.mrf.mxu0
  %v1469 = vadd.f32 0.0, %v1468
  %1470 = vmatmul.f32.gmra.mxu0 %v25
  %v1471 = vpop.f32.mrf.mxu0
  %v1472 = vadd.f32 0.0, %v1471
  %1473 = vmatmul.f32.gmra.mxu0 %v29
  %v1474 = vpop.f32.mrf.mxu0
  %v1475 = vadd.f32 0.0, %v1474
  %1476 = vmatmul.f32.gmra.mxu0 %v33
  %v1477 = vpop.f32.mrf.mxu0
  %v1478 = vadd.f32 0.0, %v1477
  %1479 = vmatmul.f32.gmra.mxu0 %v37
  %v1480 = vpop.f32.mrf.mxu0
  %v1481 = vadd.f32 0.0, %v1480
  %1482 = vmatmul.f32.gmra.mxu0 %v41
  %v1483 = vpop.f32.mrf.mxu0
  %v1484 = vadd.f32 0.0, %v1483
  %1485 = vmatmul.f32.gmra.mxu0 %v45
  %v1486 = vpop.f32.mrf.mxu0
  %v1487 = vadd.f32 0.0, %v1486
  %1488 = vmatmul.f32.gmra.mxu0 %v49
  %v1489 = vpop.f32.mrf.mxu0
  %v1490 = vadd.f32 0.0, %v1489
  %1491 = vmatmul.f32.gmra.mxu0 %v53
  %v1492 = vpop.f32.mrf.mxu0
  %v1493 = vadd.f32 0.0, %v1492
  %1494 = vdwg.mxu0
  %1495 = vmatpush.msra.mxu0 %v279
  %1496 = vmatpush.msra.mxu0 %v272
  %1497 = vmatpush.msra.mxu0 %v265
  %1498 = vmatpush.msra.mxu0 %v258
  %1499 = vmatpush.msra.mxu0 %v251
  %1500 = vmatpush.msra.mxu0 %v244
  %1501 = vmatpush.msra.mxu0 %v237
  %1502 = vmatpush.msra.mxu0 %v230
  %1503 = vmatpush.msra.mxu0 %v223
  %1504 = vmatpush.msra.mxu0 %v216
  %1505 = vmatpush.msra.mxu0 %v209
  %1506 = vmatpush.msra.mxu0 %v202
  %1507 = vmatpush.msra.mxu0 %v195
  %1508 = vmatpush.msra.mxu0 %v188
  %1509 = vmatpush.msra.mxu0 %v181
  %1510 = vmatpush.msra.mxu0 %v174
  %1511 = vmatmul.f32.gmra.mxu0 %v18
  %v1512 = vpop.f32.mrf.mxu0
  %v1513 = vadd.f32 %v1466, %v1512
  %1514 = vmatmul.f32.gmra.mxu0 %v22
  %v1515 = vpop.f32.mrf.mxu0
  %v1516 = vadd.f32 %v1469, %v1515
  %1517 = vmatmul.f32.gmra.mxu0 %v26
  %v1518 = vpop.f32.mrf.mxu0
  %v1519 = vadd.f32 %v1472, %v1518
  %1520 = vmatmul.f32.gmra.mxu0 %v30
  %v1521 = vpop.f32.mrf.mxu0
  %v1522 = vadd.f32 %v1475, %v1521
  %1523 = vmatmul.f32.gmra.mxu0 %v34
  %v1524 = vpop.f32.mrf.mxu0
  %v1525 = vadd.f32 %v1478, %v1524
  %1526 = vmatmul.f32.gmra.mxu0 %v38
  %v1527 = vpop.f32.mrf.mxu0
  %v1528 = vadd.f32 %v1481, %v1527
  %1529 = vmatmul.f32.gmra.mxu0 %v42
  %v1530 = vpop.f32.mrf.mxu0
  %v1531 = vadd.f32 %v1484, %v1530
  %1532 = vmatmul.f32.gmra.mxu0 %v46
  %v1533 = vpop.f32.mrf.mxu0
  %v1534 = vadd.f32 %v1487, %v1533
  %1535 = vmatmul.f32.gmra.mxu0 %v50
  %v1536 = vpop.f32.mrf.mxu0
  %v1537 = vadd.f32 %v1490, %v1536
  %1538 = vmatmul.f32.gmra.mxu0 %v54
  %v1539 = vpop.f32.mrf.mxu0
  %v1540 = vadd.f32 %v1493, %v1539
  %1541 = vdwg.mxu0
  %1542 = vmatpush.msra.mxu0 %v391
  %1543 = vmatpush.msra.mxu0 %v384
  %1544 = vmatpush.msra.mxu0 %v377
  %1545 = vmatpush.msra.mxu0 %v370
  %1546 = vmatpush.msra.mxu0 %v363
  %1547 = vmatpush.msra.mxu0 %v356
  %1548 = vmatpush.msra.mxu0 %v349
  %1549 = vmatpush.msra.mxu0 %v342
  %1550 = vmatpush.msra.mxu0 %v335
  %1551 = vmatpush.msra.mxu0 %v328
  %1552 = vmatpush.msra.mxu0 %v321
  %1553 = vmatpush.msra.mxu0 %v314
  %1554 = vmatpush.msra.mxu0 %v307
  %1555 = vmatpush.msra.mxu0 %v300
  %1556 = vmatpush.msra.mxu0 %v293
  %1557 = vmatpush.msra.mxu0 %v286
  %1558 = vmatmul.f32.gmra.mxu0 %v19
  %v1559 = vpop.f32.mrf.mxu0
  %v1560 = vadd.f32 %v1513, %v1559
  %1561 = vmatmul.f32.gmra.mxu0 %v23
  %v1562 = vpop.f32.mrf.mxu0
  %v1563 = vadd.f32 %v1516, %v1562
  %1564 = vmatmul.f32.gmra.mxu0 %v27
  %v1565 = vpop.f32.mrf.mxu0
  %v1566 = vadd.f32 %v1519, %v1565
  %1567 = vmatmul.f32.gmra.mxu0 %v31
  %v1568 = vpop.f32.mrf.mxu0
  %v1569 = vadd.f32 %v1522, %v1568
  %1570 = vmatmul.f32.gmra.mxu0 %v35
  %v1571 = vpop.f32.mrf.mxu0
  %v1572 = vadd.f32 %v1525, %v1571
  %1573 = vmatmul.f32.gmra.mxu0 %v39
  %v1574 = vpop.f32.mrf.mxu0
  %v1575 = vadd.f32 %v1528, %v1574
  %1576 = vmatmul.f32.gmra.mxu0 %v43
  %v1577 = vpop.f32.mrf.mxu0
  %v1578 = vadd.f32 %v1531, %v1577
  %1579 = vmatmul.f32.gmra.mxu0 %v47
  %v1580 = vpop.f32.mrf.mxu0
  %v1581 = vadd.f32 %v1534, %v1580
  %1582 = vmatmul.f32.gmra.mxu0 %v51
  %v1583 = vpop.f32.mrf.mxu0
  %v1584 = vadd.f32 %v1537, %v1583
  %1585 = vmatmul.f32.gmra.mxu0 %v55
  %v1586 = vpop.f32.mrf.mxu0
  %v1587 = vadd.f32 %v1540, %v1586
  %1588 = vdwg.mxu0
  %1589 = vmatpush.msra.mxu0 0.0
  %1590 = vmatpush.msra.mxu0 0.0
  %1591 = vmatpush.msra.mxu0 0.0
  %1592 = vmatpush.msra.mxu0 0.0
  %1593 = vmatpush.msra.mxu0 %v475
  %1594 = vmatpush.msra.mxu0 %v468
  %1595 = vmatpush.msra.mxu0 %v461
  %1596 = vmatpush.msra.mxu0 %v454
  %1597 = vmatpush.msra.mxu0 %v447
  %1598 = vmatpush.msra.mxu0 %v440
  %1599 = vmatpush.msra.mxu0 %v433
  %1600 = vmatpush.msra.mxu0 %v426
  %1601 = vmatpush.msra.mxu0 %v419
  %1602 = vmatpush.msra.mxu0 %v412
  %1603 = vmatpush.msra.mxu0 %v405
  %1604 = vmatpush.msra.mxu0 %v398
  %1605 = vmatmul.f32.gmra.mxu0 %v479
  %v1606 = vpop.f32.mrf.mxu0
  %v1607 = vadd.f32 %v1560, %v1606
  %1608 = vmatmul.f32.gmra.mxu0 %v482
  %v1609 = vpop.f32.mrf.mxu0
  %v1610 = vadd.f32 %v1563, %v1609
  %1611 = vmatmul.f32.gmra.mxu0 %v485
  %v1612 = vpop.f32.mrf.mxu0
  %v1613 = vadd.f32 %v1566, %v1612
  %1614 = vmatmul.f32.gmra.mxu0 %v488
  %v1615 = vpop.f32.mrf.mxu0
  %v1616 = vadd.f32 %v1569, %v1615
  %1617 = vmatmul.f32.gmra.mxu0 %v491
  %v1618 = vpop.f32.mrf.mxu0
  %v1619 = vadd.f32 %v1572, %v1618
  %1620 = vmatmul.f32.gmra.mxu0 %v494
  %v1621 = vpop.f32.mrf.mxu0
  %v1622 = vadd.f32 %v1575, %v1621
  %1623 = vmatmul.f32.gmra.mxu0 %v497
  %v1624 = vpop.f32.mrf.mxu0
  %v1625 = vadd.f32 %v1578, %v1624
  %1626 = vmatmul.f32.gmra.mxu0 %v500
  %v1627 = vpop.f32.mrf.mxu0
  %v1628 = vadd.f32 %v1581, %v1627
  %1629 = vmatmul.f32.gmra.mxu0 %v503
  %v1630 = vpop.f32.mrf.mxu0
  %v1631 = vadd.f32 %v1584, %v1630
  %1632 = vmatmul.f32.gmra.mxu0 %v506
  %v1633 = vpop.f32.mrf.mxu0
  %v1634 = vadd.f32 %v1587, %v1633
  %1635 = vdwg.mxu0
  %1636 = vmatpush.msra.mxu0 %v168
  %1637 = vmatpush.msra.mxu0 %v161
  %1638 = vmatpush.msra.mxu0 %v154
  %1639 = vmatpush.msra.mxu0 %v147
  %1640 = vmatpush.msra.mxu0 %v140
  %1641 = vmatpush.msra.mxu0 %v133
  %1642 = vmatpush.msra.mxu0 %v126
  %1643 = vmatpush.msra.mxu0 %v119
  %1644 = vmatpush.msra.mxu0 %v112
  %1645 = vmatpush.msra.mxu0 %v105
  %1646 = vmatpush.msra.mxu0 %v98
  %1647 = vmatpush.msra.mxu0 %v91
  %1648 = vmatpush.msra.mxu0 %v84
  %1649 = vmatpush.msra.mxu0 %v77
  %1650 = vmatpush.msra.mxu0 %v70
  %1651 = vmatpush.msra.mxu0 %v63
  %1652 = vmatmul.f32.gmra.mxu0 %v17
  %v1653 = vpop.f32.mrf.mxu0
  %v1654 = vadd.f32 0.0, %v1653
  %1655 = vmatmul.f32.gmra.mxu0 %v21
  %v1656 = vpop.f32.mrf.mxu0
  %v1657 = vadd.f32 0.0, %v1656
  %1658 = vmatmul.f32.gmra.mxu0 %v25
  %v1659 = vpop.f32.mrf.mxu0
  %v1660 = vadd.f32 0.0, %v1659
  %1661 = vmatmul.f32.gmra.mxu0 %v29
  %v1662 = vpop.f32.mrf.mxu0
  %v1663 = vadd.f32 0.0, %v1662
  %1664 = vmatmul.f32.gmra.mxu0 %v33
  %v1665 = vpop.f32.mrf.mxu0
  %v1666 = vadd.f32 0.0, %v1665
  %1667 = vmatmul.f32.gmra.mxu0 %v37
  %v1668 = vpop.f32.mrf.mxu0
  %v1669 = vadd.f32 0.0, %v1668
  %1670 = vmatmul.f32.gmra.mxu0 %v41
  %v1671 = vpop.f32.mrf.mxu0
  %v1672 = vadd.f32 0.0, %v1671
  %1673 = vmatmul.f32.gmra.mxu0 %v45
  %v1674 = vpop.f32.mrf.mxu0
  %v1675 = vadd.f32 0.0, %v1674
  %1676 = vmatmul.f32.gmra.mxu0 %v49
  %v1677 = vpop.f32.mrf.mxu0
  %v1678 = vadd.f32 0.0, %v1677
  %1679 = vmatmul.f32.gmra.mxu0 %v53
  %v1680 = vpop.f32.mrf.mxu0
  %v1681 = vadd.f32 0.0, %v1680
  %1682 = vdwg.mxu0
  %1683 = vmatpush.msra.mxu0 %v280
  %1684 = vmatpush.msra.mxu0 %v273
  %1685 = vmatpush.msra.mxu0 %v266
  %1686 = vmatpush.msra.mxu0 %v259
  %1687 = vmatpush.msra.mxu0 %v252
  %1688 = vmatpush.msra.mxu0 %v245
  %1689 = vmatpush.msra.mxu0 %v238
  %1690 = vmatpush.msra.mxu0 %v231
  %1691 = vmatpush.msra.mxu0 %v224
  %1692 = vmatpush.msra.mxu0 %v217
  %1693 = vmatpush.msra.mxu0 %v210
  %1694 = vmatpush.msra.mxu0 %v203
  %1695 = vmatpush.msra.mxu0 %v196
  %1696 = vmatpush.msra.mxu0 %v189
  %1697 = vmatpush.msra.mxu0 %v182
  %1698 = vmatpush.msra.mxu0 %v175
  %1699 = vmatmul.f32.gmra.mxu0 %v18
  %v1700 = vpop.f32.mrf.mxu0
  %v1701 = vadd.f32 %v1654, %v1700
  %1702 = vmatmul.f32.gmra.mxu0 %v22
  %v1703 = vpop.f32.mrf.mxu0
  %v1704 = vadd.f32 %v1657, %v1703
  %1705 = vmatmul.f32.gmra.mxu0 %v26
  %v1706 = vpop.f32.mrf.mxu0
  %v1707 = vadd.f32 %v1660, %v1706
  %1708 = vmatmul.f32.gmra.mxu0 %v30
  %v1709 = vpop.f32.mrf.mxu0
  %v1710 = vadd.f32 %v1663, %v1709
  %1711 = vmatmul.f32.gmra.mxu0 %v34
  %v1712 = vpop.f32.mrf.mxu0
  %v1713 = vadd.f32 %v1666, %v1712
  %1714 = vmatmul.f32.gmra.mxu0 %v38
  %v1715 = vpop.f32.mrf.mxu0
  %v1716 = vadd.f32 %v1669, %v1715
  %1717 = vmatmul.f32.gmra.mxu0 %v42
  %v1718 = vpop.f32.mrf.mxu0
  %v1719 = vadd.f32 %v1672, %v1718
  %1720 = vmatmul.f32.gmra.mxu0 %v46
  %v1721 = vpop.f32.mrf.mxu0
  %v1722 = vadd.f32 %v1675, %v1721
  %1723 = vmatmul.f32.gmra.mxu0 %v50
  %v1724 = vpop.f32.mrf.mxu0
  %v1725 = vadd.f32 %v1678, %v1724
  %1726 = vmatmul.f32.gmra.mxu0 %v54
  %v1727 = vpop.f32.mrf.mxu0
  %v1728 = vadd.f32 %v1681, %v1727
  %1729 = vdwg.mxu0
  %1730 = vmatpush.msra.mxu0 %v392
  %1731 = vmatpush.msra.mxu0 %v385
  %1732 = vmatpush.msra.mxu0 %v378
  %1733 = vmatpush.msra.mxu0 %v371
  %1734 = vmatpush.msra.mxu0 %v364
  %1735 = vmatpush.msra.mxu0 %v357
  %1736 = vmatpush.msra.mxu0 %v350
  %1737 = vmatpush.msra.mxu0 %v343
  %1738 = vmatpush.msra.mxu0 %v336
  %1739 = vmatpush.msra.mxu0 %v329
  %1740 = vmatpush.msra.mxu0 %v322
  %1741 = vmatpush.msra.mxu0 %v315
  %1742 = vmatpush.msra.mxu0 %v308
  %1743 = vmatpush.msra.mxu0 %v301
  %1744 = vmatpush.msra.mxu0 %v294
  %1745 = vmatpush.msra.mxu0 %v287
  %1746 = vmatmul.f32.gmra.mxu0 %v19
  %v1747 = vpop.f32.mrf.mxu0
  %v1748 = vadd.f32 %v1701, %v1747
  %1749 = vmatmul.f32.gmra.mxu0 %v23
  %v1750 = vpop.f32.mrf.mxu0
  %v1751 = vadd.f32 %v1704, %v1750
  %1752 = vmatmul.f32.gmra.mxu0 %v27
  %v1753 = vpop.f32.mrf.mxu0
  %v1754 = vadd.f32 %v1707, %v1753
  %1755 = vmatmul.f32.gmra.mxu0 %v31
  %v1756 = vpop.f32.mrf.mxu0
  %v1757 = vadd.f32 %v1710, %v1756
  %1758 = vmatmul.f32.gmra.mxu0 %v35
  %v1759 = vpop.f32.mrf.mxu0
  %v1760 = vadd.f32 %v1713, %v1759
  %1761 = vmatmul.f32.gmra.mxu0 %v39
  %v1762 = vpop.f32.mrf.mxu0
  %v1763 = vadd.f32 %v1716, %v1762
  %1764 = vmatmul.f32.gmra.mxu0 %v43
  %v1765 = vpop.f32.mrf.mxu0
  %v1766 = vadd.f32 %v1719, %v1765
  %1767 = vmatmul.f32.gmra.mxu0 %v47
  %v1768 = vpop.f32.mrf.mxu0
  %v1769 = vadd.f32 %v1722, %v1768
  %1770 = vmatmul.f32.gmra.mxu0 %v51
  %v1771 = vpop.f32.mrf.mxu0
  %v1772 = vadd.f32 %v1725, %v1771
  %1773 = vmatmul.f32.gmra.mxu0 %v55
  %v1774 = vpop.f32.mrf.mxu0
  %v1775 = vadd.f32 %v1728, %v1774
  %1776 = vdwg.mxu0
  %1777 = vmatpush.msra.mxu0 0.0
  %1778 = vmatpush.msra.mxu0 0.0
  %1779 = vmatpush.msra.mxu0 0.0
  %1780 = vmatpush.msra.mxu0 0.0
  %1781 = vmatpush.msra.mxu0 %v476
  %1782 = vmatpush.msra.mxu0 %v469
  %1783 = vmatpush.msra.mxu0 %v462
  %1784 = vmatpush.msra.mxu0 %v455
  %1785 = vmatpush.msra.mxu0 %v448
  %1786 = vmatpush.msra.mxu0 %v441
  %1787 = vmatpush.msra.mxu0 %v434
  %1788 = vmatpush.msra.mxu0 %v427
  %1789 = vmatpush.msra.mxu0 %v420
  %1790 = vmatpush.msra.mxu0 %v413
  %1791 = vmatpush.msra.mxu0 %v406
  %1792 = vmatpush.msra.mxu0 %v399
  %1793 = vmatmul.f32.gmra.mxu0 %v479
  %v1794 = vpop.f32.mrf.mxu0
  %v1795 = vadd.f32 %v1748, %v1794
  %1796 = vmatmul.f32.gmra.mxu0 %v482
  %v1797 = vpop.f32.mrf.mxu0
  %v1798 = vadd.f32 %v1751, %v1797
  %1799 = vmatmul.f32.gmra.mxu0 %v485
  %v1800 = vpop.f32.mrf.mxu0
  %v1801 = vadd.f32 %v1754, %v1800
  %1802 = vmatmul.f32.gmra.mxu0 %v488
  %v1803 = vpop.f32.mrf.mxu0
  %v1804 = vadd.f32 %v1757, %v1803
  %1805 = vmatmul.f32.gmra.mxu0 %v491
  %v1806 = vpop.f32.mrf.mxu0
  %v1807 = vadd.f32 %v1760, %v1806
  %1808 = vmatmul.f32.gmra.mxu0 %v494
  %v1809 = vpop.f32.mrf.mxu0
  %v1810 = vadd.f32 %v1763, %v1809
  %1811 = vmatmul.f32.gmra.mxu0 %v497
  %v1812 = vpop.f32.mrf.mxu0
  %v1813 = vadd.f32 %v1766, %v1812
  %1814 = vmatmul.f32.gmra.mxu0 %v500
  %v1815 = vpop.f32.mrf.mxu0
  %v1816 = vadd.f32 %v1769, %v1815
  %1817 = vmatmul.f32.gmra.mxu0 %v503
  %v1818 = vpop.f32.mrf.mxu0
  %v1819 = vadd.f32 %v1772, %v1818
  %1820 = vmatmul.f32.gmra.mxu0 %v506
  %v1821 = vpop.f32.mrf.mxu0
  %v1822 = vadd.f32 %v1775, %v1821
  %1823 = vdwg.mxu0
  %1824 = vst [vmem:[#allocation2] sm:$0xff] %v667
  %1825 = vst [vmem:[#allocation2 + $0x8] sm:$0xff] %v855
  %1826 = vst [vmem:[#allocation2 + $0x10] sm:$0xff] %v1043
  %1827 = vst [vmem:[#allocation2 + $0x18] sm:$0xff] %v1231
  %1828 = vst [vmem:[#allocation2 + $0x20] sm:$0xff] %v1419
  %1829 = vst [vmem:[#allocation2 + $0x28] sm:$0xff] %v1607
  %vm1830 = vcmask 130048
  %1831 = vst.msk [vmem:[#allocation2 + $0x30] sm:$0xff] %vm1830, %v1795
  %1832 = vst [vmem:[#allocation2 + $0x38] sm:$0xff] %v670
  %1833 = vst [vmem:[#allocation2 + $0x40] sm:$0xff] %v858
  %1834 = vst [vmem:[#allocation2 + $0x48] sm:$0xff] %v1046
  %1835 = vst [vmem:[#allocation2 + $0x50] sm:$0xff] %v1234
  %1836 = vst [vmem:[#allocation2 + $0x58] sm:$0xff] %v1422
  %1837 = vst [vmem:[#allocation2 + $0x60] sm:$0xff] %v1610
  %1838 = vst.msk [vmem:[#allocation2 + $0x68] sm:$0xff] %vm1830, %v1798
  %1839 = vst [vmem:[#allocation2 + $0x70] sm:$0xff] %v673
  %1840 = vst [vmem:[#allocation2 + $0x78] sm:$0xff] %v861
  %1841 = vst [vmem:[#allocation2 + $0x80] sm:$0xff] %v1049
  %1842 = vst [vmem:[#allocation2 + $0x88] sm:$0xff] %v1237
  %1843 = vst [vmem:[#allocation2 + $0x90] sm:$0xff] %v1425
  %1844 = vst [vmem:[#allocation2 + $0x98] sm:$0xff] %v1613
  %1845 = vst.msk [vmem:[#allocation2 + $0xa0] sm:$0xff] %vm1830, %v1801
  %1846 = vst [vmem:[#allocation2 + $0xa8] sm:$0xff] %v676
  %1847 = vst [vmem:[#allocation2 + $0xb0] sm:$0xff] %v864
  %1848 = vst [vmem:[#allocation2 + $0xb8] sm:$0xff] %v1052
  %1849 = vst [vmem:[#allocation2 + $0xc0] sm:$0xff] %v1240
  %1850 = vst [vmem:[#allocation2 + $0xc8] sm:$0xff] %v1428
  %1851 = vst [vmem:[#allocation2 + $0xd0] sm:$0xff] %v1616
  %1852 = vst.msk [vmem:[#allocation2 + $0xd8] sm:$0xff] %vm1830, %v1804
  %1853 = vst [vmem:[#allocation2 + $0xe0] sm:$0xff] %v679
  %1854 = vst [vmem:[#allocation2 + $0xe8] sm:$0xff] %v867
  %1855 = vst [vmem:[#allocation2 + $0xf0] sm:$0xff] %v1055
  %1856 = vst [vmem:[#allocation2 + $0xf8] sm:$0xff] %v1243
  %1857 = vst [vmem:[#allocation2 + $0x100] sm:$0xff] %v1431
  %1858 = vst [vmem:[#allocation2 + $0x108] sm:$0xff] %v1619
  %1859 = vst.msk [vmem:[#allocation2 + $0x110] sm:$0xff] %vm1830, %v1807
  %1860 = vst [vmem:[#allocation2 + $0x118] sm:$0xff] %v682
  %1861 = vst [vmem:[#allocation2 + $0x120] sm:$0xff] %v870
  %1862 = vst [vmem:[#allocation2 + $0x128] sm:$0xff] %v1058
  %1863 = vst [vmem:[#allocation2 + $0x130] sm:$0xff] %v1246
  %1864 = vst [vmem:[#allocation2 + $0x138] sm:$0xff] %v1434
  %1865 = vst [vmem:[#allocation2 + $0x140] sm:$0xff] %v1622
  %1866 = vst.msk [vmem:[#allocation2 + $0x148] sm:$0xff] %vm1830, %v1810
  %1867 = vst [vmem:[#allocation2 + $0x150] sm:$0xff] %v685
  %1868 = vst [vmem:[#allocation2 + $0x158] sm:$0xff] %v873
  %1869 = vst [vmem:[#allocation2 + $0x160] sm:$0xff] %v1061
  %1870 = vst [vmem:[#allocation2 + $0x168] sm:$0xff] %v1249
  %1871 = vst [vmem:[#allocation2 + $0x170] sm:$0xff] %v1437
  %1872 = vst [vmem:[#allocation2 + $0x178] sm:$0xff] %v1625
  %1873 = vst.msk [vmem:[#allocation2 + $0x180] sm:$0xff] %vm1830, %v1813
  %1874 = vst [vmem:[#allocation2 + $0x188] sm:$0xff] %v688
  %1875 = vst [vmem:[#allocation2 + $0x190] sm:$0xff] %v876
  %1876 = vst [vmem:[#allocation2 + $0x198] sm:$0xff] %v1064
  %1877 = vst [vmem:[#allocation2 + $0x1a0] sm:$0xff] %v1252
  %1878 = vst [vmem:[#allocation2 + $0x1a8] sm:$0xff] %v1440
  %1879 = vst [vmem:[#allocation2 + $0x1b0] sm:$0xff] %v1628
  %1880 = vst.msk [vmem:[#allocation2 + $0x1b8] sm:$0xff] %vm1830, %v1816
  %1881 = vst [vmem:[#allocation2 + $0x1c0] sm:$0xff] %v691
  %1882 = vst [vmem:[#allocation2 + $0x1c8] sm:$0xff] %v879
  %1883 = vst [vmem:[#allocation2 + $0x1d0] sm:$0xff] %v1067
  %1884 = vst [vmem:[#allocation2 + $0x1d8] sm:$0xff] %v1255
  %1885 = vst [vmem:[#allocation2 + $0x1e0] sm:$0xff] %v1443
  %1886 = vst [vmem:[#allocation2 + $0x1e8] sm:$0xff] %v1631
  %1887 = vst.msk [vmem:[#allocation2 + $0x1f0] sm:$0xff] %vm1830, %v1819
  %1888 = vst [vmem:[#allocation2 + $0x1f8] sm:$0xff] %v694
  %1889 = vst [vmem:[#allocation2 + $0x200] sm:$0xff] %v882
  %1890 = vst [vmem:[#allocation2 + $0x208] sm:$0xff] %v1070
  %1891 = vst [vmem:[#allocation2 + $0x210] sm:$0xff] %v1258
  %1892 = vst [vmem:[#allocation2 + $0x218] sm:$0xff] %v1446
  %1893 = vst [vmem:[#allocation2 + $0x220] sm:$0xff] %v1634
  %1894 = vst.msk [vmem:[#allocation2 + $0x228] sm:$0xff] %vm1830, %v1822
  %v1895 = vld [vmem:[#allocation2] sm:$0xff]
  %v1896 = vld [vmem:[#allocation2 + $0x8] sm:$0xff]
  %v1897 = vld [vmem:[#allocation2 + $0x10] sm:$0xff]
  %v1898 = vld [vmem:[#allocation2 + $0x18] sm:$0xff]
  %v1899 = vld [vmem:[#allocation2 + $0x20] sm:$0xff]
  %v1900 = vld [vmem:[#allocation2 + $0x28] sm:$0xff]
  %v1901 = vld [vmem:[#allocation2 + $0x30] sm:$0xff]
  %v1902 = vld [vmem:[#allocation2 + $0x38] sm:$0xff]
  %v1903 = vld [vmem:[#allocation2 + $0x40] sm:$0xff]
  %v1904 = vld [vmem:[#allocation2 + $0x48] sm:$0xff]
  %v1905 = vld [vmem:[#allocation2 + $0x50] sm:$0xff]
  %v1906 = vld [vmem:[#allocation2 + $0x58] sm:$0xff]
  %v1907 = vld [vmem:[#allocation2 + $0x60] sm:$0xff]
  %v1908 = vld [vmem:[#allocation2 + $0x68] sm:$0xff]
  %v1909 = vld [vmem:[#allocation2 + $0x70] sm:$0xff]
  %v1910 = vld [vmem:[#allocation2 + $0x78] sm:$0xff]
  %v1911 = vld [vmem:[#allocation2 + $0x80] sm:$0xff]
  %v1912 = vld [vmem:[#allocation2 + $0x88] sm:$0xff]
  %v1913 = vld [vmem:[#allocation2 + $0x90] sm:$0xff]
  %v1914 = vld [vmem:[#allocation2 + $0x98] sm:$0xff]
  %v1915 = vld [vmem:[#allocation2 + $0xa0] sm:$0xff]
  %v1916 = vld [vmem:[#allocation2 + $0xa8] sm:$0xff]
  %v1917 = vld [vmem:[#allocation2 + $0xb0] sm:$0xff]
  %v1918 = vld [vmem:[#allocation2 + $0xb8] sm:$0xff]
  %v1919 = vld [vmem:[#allocation2 + $0xc0] sm:$0xff]
  %v1920 = vld [vmem:[#allocation2 + $0xc8] sm:$0xff]
  %v1921 = vld [vmem:[#allocation2 + $0xd0] sm:$0xff]
  %v1922 = vld [vmem:[#allocation2 + $0xd8] sm:$0xff]
  %v1923 = vld [vmem:[#allocation2 + $0xe0] sm:$0xff]
  %v1924 = vld [vmem:[#allocation2 + $0xe8] sm:$0xff]
  %v1925 = vld [vmem:[#allocation2 + $0xf0] sm:$0xff]
  %v1926 = vld [vmem:[#allocation2 + $0xf8] sm:$0xff]
  %v1927 = vld [vmem:[#allocation2 + $0x100] sm:$0xff]
  %v1928 = vld [vmem:[#allocation2 + $0x108] sm:$0xff]
  %v1929 = vld [vmem:[#allocation2 + $0x110] sm:$0xff]
  %v1930 = vld [vmem:[#allocation2 + $0x118] sm:$0xff]
  %v1931 = vld [vmem:[#allocation2 + $0x120] sm:$0xff]
  %v1932 = vld [vmem:[#allocation2 + $0x128] sm:$0xff]
  %v1933 = vld [vmem:[#allocation2 + $0x130] sm:$0xff]
  %v1934 = vld [vmem:[#allocation2 + $0x138] sm:$0xff]
  %v1935 = vld [vmem:[#allocation2 + $0x140] sm:$0xff]
  %v1936 = vld [vmem:[#allocation2 + $0x148] sm:$0xff]
  %v1937 = vld [vmem:[#allocation2 + $0x150] sm:$0xff]
  %v1938 = vld [vmem:[#allocation2 + $0x158] sm:$0xff]
  %v1939 = vld [vmem:[#allocation2 + $0x160] sm:$0xff]
  %v1940 = vld [vmem:[#allocation2 + $0x168] sm:$0xff]
  %v1941 = vld [vmem:[#allocation2 + $0x170] sm:$0xff]
  %v1942 = vld [vmem:[#allocation2 + $0x178] sm:$0xff]
  %v1943 = vld [vmem:[#allocation2 + $0x180] sm:$0xff]
  %v1944 = vld [vmem:[#allocation2 + $0x188] sm:$0xff]
  %v1945 = vld [vmem:[#allocation2 + $0x190] sm:$0xff]
  %v1946 = vld [vmem:[#allocation2 + $0x198] sm:$0xff]
  %v1947 = vld [vmem:[#allocation2 + $0x1a0] sm:$0xff]
  %v1948 = vld [vmem:[#allocation2 + $0x1a8] sm:$0xff]
  %v1949 = vld [vmem:[#allocation2 + $0x1b0] sm:$0xff]
  %v1950 = vld [vmem:[#allocation2 + $0x1b8] sm:$0xff]
  %v1951 = vld [vmem:[#allocation2 + $0x1c0] sm:$0xff]
  %v1952 = vld [vmem:[#allocation2 + $0x1c8] sm:$0xff]
  %v1953 = vld [vmem:[#allocation2 + $0x1d0] sm:$0xff]
  %v1954 = vld [vmem:[#allocation2 + $0x1d8] sm:$0xff]
  %v1955 = vld [vmem:[#allocation2 + $0x1e0] sm:$0xff]
  %v1956 = vld [vmem:[#allocation2 + $0x1e8] sm:$0xff]
  %v1957 = vld [vmem:[#allocation2 + $0x1f0] sm:$0xff]
  %v1958 = vld [vmem:[#allocation2 + $0x1f8] sm:$0xff]
  %v1959 = vld [vmem:[#allocation2 + $0x200] sm:$0xff]
  %v1960 = vld [vmem:[#allocation2 + $0x208] sm:$0xff]
  %v1961 = vld [vmem:[#allocation2 + $0x210] sm:$0xff]
  %v1962 = vld [vmem:[#allocation2 + $0x218] sm:$0xff]
  %v1963 = vld [vmem:[#allocation2 + $0x220] sm:$0xff]
  %v1964 = vld [vmem:[#allocation2 + $0x228] sm:$0xff]
  %v1965 = vadd.f32 %v1895, %v1896
  %v1966 = vadd.f32 %v1965, %v1897
  %v1967 = vadd.f32 %v1966, %v1898
  %v1968 = vadd.f32 %v1967, %v1899
  %v1969 = vadd.f32 %v1968, %v1900
  %v1970 = vsel %vm1830, %v1901, 0.0
  %v1971 = vadd.f32 %v1969, %v1970
  %1972 = vadd.xlane.f32.xlu0 %v1971
  %v1973 = vpop.xlane.xlu0 %1972
  %v1974 = vadd.f32 %v1902, %v1903
  %v1975 = vadd.f32 %v1974, %v1904
  %v1976 = vadd.f32 %v1975, %v1905
  %v1977 = vadd.f32 %v1976, %v1906
  %v1978 = vadd.f32 %v1977, %v1907
  %v1979 = vsel %vm1830, %v1908, 0.0
  %v1980 = vadd.f32 %v1978, %v1979
  %1981 = vadd.xlane.f32.xlu0 %v1980
  %v1982 = vpop.xlane.xlu0 %1981
  %v1983 = vadd.f32 %v1909, %v1910
  %v1984 = vadd.f32 %v1983, %v1911
  %v1985 = vadd.f32 %v1984, %v1912
  %v1986 = vadd.f32 %v1985, %v1913
  %v1987 = vadd.f32 %v1986, %v1914
  %v1988 = vsel %vm1830, %v1915, 0.0
  %v1989 = vadd.f32 %v1987, %v1988
  %1990 = vadd.xlane.f32.xlu0 %v1989
  %v1991 = vpop.xlane.xlu0 %1990
  %v1992 = vadd.f32 %v1916, %v1917
  %v1993 = vadd.f32 %v1992, %v1918
  %v1994 = vadd.f32 %v1993, %v1919
  %v1995 = vadd.f32 %v1994, %v1920
  %v1996 = vadd.f32 %v1995, %v1921
  %v1997 = vsel %vm1830, %v1922, 0.0
  %v1998 = vadd.f32 %v1996, %v1997
  %1999 = vadd.xlane.f32.xlu0 %v1998
  %v2000 = vpop.xlane.xlu0 %1999
  %v2001 = vadd.f32 %v1923, %v1924
  %v2002 = vadd.f32 %v2001, %v1925
  %v2003 = vadd.f32 %v2002, %v1926
  %v2004 = vadd.f32 %v2003, %v1927
  %v2005 = vadd.f32 %v2004, %v1928
  %v2006 = vsel %vm1830, %v1929, 0.0
  %v2007 = vadd.f32 %v2005, %v2006
  %2008 = vadd.xlane.f32.xlu0 %v2007
  %v2009 = vpop.xlane.xlu0 %2008
  %v2010 = vadd.f32 %v1930, %v1931
  %v2011 = vadd.f32 %v2010, %v1932
  %v2012 = vadd.f32 %v2011, %v1933
  %v2013 = vadd.f32 %v2012, %v1934
  %v2014 = vadd.f32 %v2013, %v1935
  %v2015 = vsel %vm1830, %v1936, 0.0
  %v2016 = vadd.f32 %v2014, %v2015
  %2017 = vadd.xlane.f32.xlu0 %v2016
  %v2018 = vpop.xlane.xlu0 %2017
  %v2019 = vadd.f32 %v1937, %v1938
  %v2020 = vadd.f32 %v2019, %v1939
  %v2021 = vadd.f32 %v2020, %v1940
  %v2022 = vadd.f32 %v2021, %v1941
  %v2023 = vadd.f32 %v2022, %v1942
  %v2024 = vsel %vm1830, %v1943, 0.0
  %v2025 = vadd.f32 %v2023, %v2024
  %2026 = vadd.xlane.f32.xlu0 %v2025
  %v2027 = vpop.xlane.xlu0 %2026
  %v2028 = vadd.f32 %v1944, %v1945
  %v2029 = vadd.f32 %v2028, %v1946
  %v2030 = vadd.f32 %v2029, %v1947
  %v2031 = vadd.f32 %v2030, %v1948
  %v2032 = vadd.f32 %v2031, %v1949
  %v2033 = vsel %vm1830, %v1950, 0.0
  %v2034 = vadd.f32 %v2032, %v2033
  %2035 = vadd.xlane.f32.xlu0 %v2034
  %v2036 = vpop.xlane.xlu0 %2035
  %v2037 = vadd.f32 %v1951, %v1952
  %v2038 = vadd.f32 %v2037, %v1953
  %v2039 = vadd.f32 %v2038, %v1954
  %v2040 = vadd.f32 %v2039, %v1955
  %v2041 = vadd.f32 %v2040, %v1956
  %v2042 = vsel %vm1830, %v1957, 0.0
  %v2043 = vadd.f32 %v2041, %v2042
  %2044 = vadd.xlane.f32.xlu0 %v2043
  %v2045 = vpop.xlane.xlu0 %2044
  %v2046 = vadd.f32 %v1958, %v1959
  %v2047 = vadd.f32 %v2046, %v1960
  %v2048 = vadd.f32 %v2047, %v1961
  %v2049 = vadd.f32 %v2048, %v1962
  %v2050 = vadd.f32 %v2049, %v1963
  %v2051 = vsel %vm1830, %v1964, 0.0
  %v2052 = vadd.f32 %v2050, %v2051
  %2053 = vadd.xlane.f32.xlu0 %v2052
  %v2054 = vpop.xlane.xlu0 %2053
  %v2055 = vmul.f32 %v1895, %v1895
  %v2056 = vmul.f32 %v1896, %v1896
  %v2057 = vmul.f32 %v1897, %v1897
  %v2058 = vmul.f32 %v1898, %v1898
  %v2059 = vmul.f32 %v1899, %v1899
  %v2060 = vmul.f32 %v1900, %v1900
  %v2061 = vmul.f32 %v1901, %v1901
  %v2062 = vmul.f32 %v1902, %v1902
  %v2063 = vmul.f32 %v1903, %v1903
  %v2064 = vmul.f32 %v1904, %v1904
  %v2065 = vmul.f32 %v1905, %v1905
  %v2066 = vmul.f32 %v1906, %v1906
  %v2067 = vmul.f32 %v1907, %v1907
  %v2068 = vmul.f32 %v1908, %v1908
  %v2069 = vmul.f32 %v1909, %v1909
  %v2070 = vmul.f32 %v1910, %v1910
  %v2071 = vmul.f32 %v1911, %v1911
  %v2072 = vmul.f32 %v1912, %v1912
  %v2073 = vmul.f32 %v1913, %v1913
  %v2074 = vmul.f32 %v1914, %v1914
  %v2075 = vmul.f32 %v1915, %v1915
  %v2076 = vmul.f32 %v1916, %v1916
  %v2077 = vmul.f32 %v1917, %v1917
  %v2078 = vmul.f32 %v1918, %v1918
  %v2079 = vmul.f32 %v1919, %v1919
  %v2080 = vmul.f32 %v1920, %v1920
  %v2081 = vmul.f32 %v1921, %v1921
  %v2082 = vmul.f32 %v1922, %v1922
  %v2083 = vmul.f32 %v1923, %v1923
  %v2084 = vmul.f32 %v1924, %v1924
  %v2085 = vmul.f32 %v1925, %v1925
  %v2086 = vmul.f32 %v1926, %v1926
  %v2087 = vmul.f32 %v1927, %v1927
  %v2088 = vmul.f32 %v1928, %v1928
  %v2089 = vmul.f32 %v1929, %v1929
  %v2090 = vmul.f32 %v1930, %v1930
  %v2091 = vmul.f32 %v1931, %v1931
  %v2092 = vmul.f32 %v1932, %v1932
  %v2093 = vmul.f32 %v1933, %v1933
  %v2094 = vmul.f32 %v1934, %v1934
  %v2095 = vmul.f32 %v1935, %v1935
  %v2096 = vmul.f32 %v1936, %v1936
  %v2097 = vmul.f32 %v1937, %v1937
  %v2098 = vmul.f32 %v1938, %v1938
  %v2099 = vmul.f32 %v1939, %v1939
  %v2100 = vmul.f32 %v1940, %v1940
  %v2101 = vmul.f32 %v1941, %v1941
  %v2102 = vmul.f32 %v1942, %v1942
  %v2103 = vmul.f32 %v1943, %v1943
  %v2104 = vmul.f32 %v1944, %v1944
  %v2105 = vmul.f32 %v1945, %v1945
  %v2106 = vmul.f32 %v1946, %v1946
  %v2107 = vmul.f32 %v1947, %v1947
  %v2108 = vmul.f32 %v1948, %v1948
  %v2109 = vmul.f32 %v1949, %v1949
  %v2110 = vmul.f32 %v1950, %v1950
  %v2111 = vmul.f32 %v1951, %v1951
  %v2112 = vmul.f32 %v1952, %v1952
  %v2113 = vmul.f32 %v1953, %v1953
  %v2114 = vmul.f32 %v1954, %v1954
  %v2115 = vmul.f32 %v1955, %v1955
  %v2116 = vmul.f32 %v1956, %v1956
  %v2117 = vmul.f32 %v1957, %v1957
  %v2118 = vmul.f32 %v1958, %v1958
  %v2119 = vmul.f32 %v1959, %v1959
  %v2120 = vmul.f32 %v1960, %v1960
  %v2121 = vmul.f32 %v1961, %v1961
  %v2122 = vmul.f32 %v1962, %v1962
  %v2123 = vmul.f32 %v1963, %v1963
  %v2124 = vmul.f32 %v1964, %v1964
  %v2125 = vadd.f32 %v2055, %v2056
  %v2126 = vadd.f32 %v2125, %v2057
  %v2127 = vadd.f32 %v2126, %v2058
  %v2128 = vadd.f32 %v2127, %v2059
  %v2129 = vadd.f32 %v2128, %v2060
  %v2130 = vsel %vm1830, %v2061, 0.0
  %v2131 = vadd.f32 %v2129, %v2130
  %2132 = vadd.xlane.f32.xlu0 %v2131
  %v2133 = vpop.xlane.xlu0 %2132
  %v2134 = vadd.f32 %v2062, %v2063
  %v2135 = vadd.f32 %v2134, %v2064
  %v2136 = vadd.f32 %v2135, %v2065
  %v2137 = vadd.f32 %v2136, %v2066
  %v2138 = vadd.f32 %v2137, %v2067
  %v2139 = vsel %vm1830, %v2068, 0.0
  %v2140 = vadd.f32 %v2138, %v2139
  %2141 = vadd.xlane.f32.xlu0 %v2140
  %v2142 = vpop.xlane.xlu0 %2141
  %v2143 = vadd.f32 %v2069, %v2070
  %v2144 = vadd.f32 %v2143, %v2071
  %v2145 = vadd.f32 %v2144, %v2072
  %v2146 = vadd.f32 %v2145, %v2073
  %v2147 = vadd.f32 %v2146, %v2074
  %v2148 = vsel %vm1830, %v2075, 0.0
  %v2149 = vadd.f32 %v2147, %v2148
  %2150 = vadd.xlane.f32.xlu0 %v2149
  %v2151 = vpop.xlane.xlu0 %2150
  %v2152 = vadd.f32 %v2076, %v2077
  %v2153 = vadd.f32 %v2152, %v2078
  %v2154 = vadd.f32 %v2153, %v2079
  %v2155 = vadd.f32 %v2154, %v2080
  %v2156 = vadd.f32 %v2155, %v2081
  %v2157 = vsel %vm1830, %v2082, 0.0
  %v2158 = vadd.f32 %v2156, %v2157
  %2159 = vadd.xlane.f32.xlu0 %v2158
  %v2160 = vpop.xlane.xlu0 %2159
  %v2161 = vadd.f32 %v2083, %v2084
  %v2162 = vadd.f32 %v2161, %v2085
  %v2163 = vadd.f32 %v2162, %v2086
  %v2164 = vadd.f32 %v2163, %v2087
  %v2165 = vadd.f32 %v2164, %v2088
  %v2166 = vsel %vm1830, %v2089, 0.0
  %v2167 = vadd.f32 %v2165, %v2166
  %2168 = vadd.xlane.f32.xlu0 %v2167
  %v2169 = vpop.xlane.xlu0 %2168
  %v2170 = vadd.f32 %v2090, %v2091
  %v2171 = vadd.f32 %v2170, %v2092
  %v2172 = vadd.f32 %v2171, %v2093
  %v2173 = vadd.f32 %v2172, %v2094
  %v2174 = vadd.f32 %v2173, %v2095
  %v2175 = vsel %vm1830, %v2096, 0.0
  %v2176 = vadd.f32 %v2174, %v2175
  %2177 = vadd.xlane.f32.xlu0 %v2176
  %v2178 = vpop.xlane.xlu0 %2177
  %v2179 = vadd.f32 %v2097, %v2098
  %v2180 = vadd.f32 %v2179, %v2099
  %v2181 = vadd.f32 %v2180, %v2100
  %v2182 = vadd.f32 %v2181, %v2101
  %v2183 = vadd.f32 %v2182, %v2102
  %v2184 = vsel %vm1830, %v2103, 0.0
  %v2185 = vadd.f32 %v2183, %v2184
  %2186 = vadd.xlane.f32.xlu0 %v2185
  %v2187 = vpop.xlane.xlu0 %2186
  %v2188 = vadd.f32 %v2104, %v2105
  %v2189 = vadd.f32 %v2188, %v2106
  %v2190 = vadd.f32 %v2189, %v2107
  %v2191 = vadd.f32 %v2190, %v2108
  %v2192 = vadd.f32 %v2191, %v2109
  %v2193 = vsel %vm1830, %v2110, 0.0
  %v2194 = vadd.f32 %v2192, %v2193
  %2195 = vadd.xlane.f32.xlu0 %v2194
  %v2196 = vpop.xlane.xlu0 %2195
  %v2197 = vadd.f32 %v2111, %v2112
  %v2198 = vadd.f32 %v2197, %v2113
  %v2199 = vadd.f32 %v2198, %v2114
  %v2200 = vadd.f32 %v2199, %v2115
  %v2201 = vadd.f32 %v2200, %v2116
  %v2202 = vsel %vm1830, %v2117, 0.0
  %v2203 = vadd.f32 %v2201, %v2202
  %2204 = vadd.xlane.f32.xlu0 %v2203
  %v2205 = vpop.xlane.xlu0 %2204
  %v2206 = vadd.f32 %v2118, %v2119
  %v2207 = vadd.f32 %v2206, %v2120
  %v2208 = vadd.f32 %v2207, %v2121
  %v2209 = vadd.f32 %v2208, %v2122
  %v2210 = vadd.f32 %v2209, %v2123
  %v2211 = vsel %vm1830, %v2124, 0.0
  %v2212 = vadd.f32 %v2210, %v2211
  %2213 = vadd.xlane.f32.xlu0 %v2212
  %v2214 = vpop.xlane.xlu0 %2213
  %v2215 = vmul.f32 %v1973, 0.0012755102
  %v2216 = vmul.f32 %v1982, 0.0012755102
  %v2217 = vmul.f32 %v1991, 0.0012755102
  %v2218 = vmul.f32 %v2000, 0.0012755102
  %v2219 = vmul.f32 %v2009, 0.0012755102
  %v2220 = vmul.f32 %v2018, 0.0012755102
  %v2221 = vmul.f32 %v2027, 0.0012755102
  %v2222 = vmul.f32 %v2036, 0.0012755102
  %v2223 = vmul.f32 %v2045, 0.0012755102
  %v2224 = vmul.f32 %v2054, 0.0012755102
  %v2225 = vmul.f32 %v2133, 0.0012755102
  %v2226 = vmul.f32 %v2142, 0.0012755102
  %v2227 = vmul.f32 %v2151, 0.0012755102
  %v2228 = vmul.f32 %v2160, 0.0012755102
  %v2229 = vmul.f32 %v2169, 0.0012755102
  %v2230 = vmul.f32 %v2178, 0.0012755102
  %v2231 = vmul.f32 %v2187, 0.0012755102
  %v2232 = vmul.f32 %v2196, 0.0012755102
  %v2233 = vmul.f32 %v2205, 0.0012755102
  %v2234 = vmul.f32 %v2214, 0.0012755102
  %v2235 = vmul.f32 %v2215, %v2215
  %v2236 = vmul.f32 %v2216, %v2216
  %v2237 = vmul.f32 %v2217, %v2217
  %v2238 = vmul.f32 %v2218, %v2218
  %v2239 = vmul.f32 %v2219, %v2219
  %v2240 = vmul.f32 %v2220, %v2220
  %v2241 = vmul.f32 %v2221, %v2221
  %v2242 = vmul.f32 %v2222, %v2222
  %v2243 = vmul.f32 %v2223, %v2223
  %v2244 = vmul.f32 %v2224, %v2224
  %v2245 = vsub.f32 %v2225, %v2235
  %v2246 = vsub.f32 %v2226, %v2236
  %v2247 = vsub.f32 %v2227, %v2237
  %v2248 = vsub.f32 %v2228, %v2238
  %v2249 = vsub.f32 %v2229, %v2239
  %v2250 = vsub.f32 %v2230, %v2240
  %v2251 = vsub.f32 %v2231, %v2241
  %v2252 = vsub.f32 %v2232, %v2242
  %v2253 = vsub.f32 %v2233, %v2243
  %v2254 = vsub.f32 %v2234, %v2244
  %v2255 = vmax.f32 %v2245, 0.0
  %v2256 = vmax.f32 %v2246, 0.0
  %v2257 = vmax.f32 %v2247, 0.0
  %v2258 = vmax.f32 %v2248, 0.0
  %v2259 = vmax.f32 %v2249, 0.0
  %v2260 = vmax.f32 %v2250, 0.0
  %v2261 = vmax.f32 %v2251, 0.0
  %v2262 = vmax.f32 %v2252, 0.0
  %v2263 = vmax.f32 %v2253, 0.0
  %v2264 = vmax.f32 %v2254, 0.0
  %v2265 = vadd.f32 %v2255, 0.001
  %v2266 = vadd.f32 %v2256, 0.001
  %v2267 = vadd.f32 %v2257, 0.001
  %v2268 = vadd.f32 %v2258, 0.001
  %v2269 = vadd.f32 %v2259, 0.001
  %v2270 = vadd.f32 %v2260, 0.001
  %v2271 = vadd.f32 %v2261, 0.001
  %v2272 = vadd.f32 %v2262, 0.001
  %v2273 = vadd.f32 %v2263, 0.001
  %v2274 = vadd.f32 %v2264, 0.001
  %v2275 = vrsqrt.pop %v2265
  %v2276 = vmul.f32 %v2275, %v2265
  %v2277 = vmul.f32 %v2276, %v2275
  %v2278 = vmul.f32 0.5, %v2277
  %v2279 = vsub.f32 1.5, %v2278
  %v2280 = vmul.f32 %v2275, %v2279
  %vm2281 = vweird.f32 %v2265
  %vm2282 = vweird.f32 %v2275
  %vm2283 = vmor %vm2281, %vm2282
  %v2284 = vsel %vm2283, %v2275, %v2280
  %v2285 = vrsqrt.pop %v2266
  %v2286 = vmul.f32 %v2285, %v2266
  %v2287 = vmul.f32 %v2286, %v2285
  %v2288 = vmul.f32 0.5, %v2287
  %v2289 = vsub.f32 1.5, %v2288
  %v2290 = vmul.f32 %v2285, %v2289
  %vm2291 = vweird.f32 %v2266
  %vm2292 = vweird.f32 %v2285
  %vm2293 = vmor %vm2291, %vm2292
  %v2294 = vsel %vm2293, %v2285, %v2290
  %v2295 = vrsqrt.pop %v2267
  %v2296 = vmul.f32 %v2295, %v2267
  %v2297 = vmul.f32 %v2296, %v2295
  %v2298 = vmul.f32 0.5, %v2297
  %v2299 = vsub.f32 1.5, %v2298
  %v2300 = vmul.f32 %v2295, %v2299
  %vm2301 = vweird.f32 %v2267
  %vm2302 = vweird.f32 %v2295
  %vm2303 = vmor %vm2301, %vm2302
  %v2304 = vsel %vm2303, %v2295, %v2300
  %v2305 = vrsqrt.pop %v2268
  %v2306 = vmul.f32 %v2305, %v2268
  %v2307 = vmul.f32 %v2306, %v2305
  %v2308 = vmul.f32 0.5, %v2307
  %v2309 = vsub.f32 1.5, %v2308
  %v2310 = vmul.f32 %v2305, %v2309
  %vm2311 = vweird.f32 %v2268
  %vm2312 = vweird.f32 %v2305
  %vm2313 = vmor %vm2311, %vm2312
  %v2314 = vsel %vm2313, %v2305, %v2310
  %v2315 = vrsqrt.pop %v2269
  %v2316 = vmul.f32 %v2315, %v2269
  %v2317 = vmul.f32 %v2316, %v2315
  %v2318 = vmul.f32 0.5, %v2317
  %v2319 = vsub.f32 1.5, %v2318
  %v2320 = vmul.f32 %v2315, %v2319
  %vm2321 = vweird.f32 %v2269
  %vm2322 = vweird.f32 %v2315
  %vm2323 = vmor %vm2321, %vm2322
  %v2324 = vsel %vm2323, %v2315, %v2320
  %v2325 = vrsqrt.pop %v2270
  %v2326 = vmul.f32 %v2325, %v2270
  %v2327 = vmul.f32 %v2326, %v2325
  %v2328 = vmul.f32 0.5, %v2327
  %v2329 = vsub.f32 1.5, %v2328
  %v2330 = vmul.f32 %v2325, %v2329
  %vm2331 = vweird.f32 %v2270
  %vm2332 = vweird.f32 %v2325
  %vm2333 = vmor %vm2331, %vm2332
  %v2334 = vsel %vm2333, %v2325, %v2330
  %v2335 = vrsqrt.pop %v2271
  %v2336 = vmul.f32 %v2335, %v2271
  %v2337 = vmul.f32 %v2336, %v2335
  %v2338 = vmul.f32 0.5, %v2337
  %v2339 = vsub.f32 1.5, %v2338
  %v2340 = vmul.f32 %v2335, %v2339
  %vm2341 = vweird.f32 %v2271
  %vm2342 = vweird.f32 %v2335
  %vm2343 = vmor %vm2341, %vm2342
  %v2344 = vsel %vm2343, %v2335, %v2340
  %v2345 = vrsqrt.pop %v2272
  %v2346 = vmul.f32 %v2345, %v2272
  %v2347 = vmul.f32 %v2346, %v2345
  %v2348 = vmul.f32 0.5, %v2347
  %v2349 = vsub.f32 1.5, %v2348
  %v2350 = vmul.f32 %v2345, %v2349
  %vm2351 = vweird.f32 %v2272
  %vm2352 = vweird.f32 %v2345
  %vm2353 = vmor %vm2351, %vm2352
  %v2354 = vsel %vm2353, %v2345, %v2350
  %v2355 = vrsqrt.pop %v2273
  %v2356 = vmul.f32 %v2355, %v2273
  %v2357 = vmul.f32 %v2356, %v2355
  %v2358 = vmul.f32 0.5, %v2357
  %v2359 = vsub.f32 1.5, %v2358
  %v2360 = vmul.f32 %v2355, %v2359
  %vm2361 = vweird.f32 %v2273
  %vm2362 = vweird.f32 %v2355
  %vm2363 = vmor %vm2361, %vm2362
  %v2364 = vsel %vm2363, %v2355, %v2360
  %v2365 = vrsqrt.pop %v2274
  %v2366 = vmul.f32 %v2365, %v2274
  %v2367 = vmul.f32 %v2366, %v2365
  %v2368 = vmul.f32 0.5, %v2367
  %v2369 = vsub.f32 1.5, %v2368
  %v2370 = vmul.f32 %v2365, %v2369
  %vm2371 = vweird.f32 %v2274
  %vm2372 = vweird.f32 %v2365
  %vm2373 = vmor %vm2371, %vm2372
  %v2374 = vsel %vm2373, %v2365, %v2370
  %v2375 = vld [vmem:[%s2] sm:$0xff]
  %v2376 = vld [vmem:[%s2 + $0x8] sm:$0xff]
  %v2377 = vld [vmem:[%s2 + $0x10] sm:$0xff]
  %v2378 = vld [vmem:[%s2 + $0x18] sm:$0xff]
  %v2379 = vld [vmem:[%s2 + $0x20] sm:$0xff]
  %v2380 = vld [vmem:[%s2 + $0x28] sm:$0xff]
  %v2381 = vld [vmem:[%s2 + $0x30] sm:$0xff]
  %v2382 = vld [vmem:[%s2 + $0x38] sm:$0xff]
  %v2383 = vld [vmem:[%s2 + $0x40] sm:$0xff]
  %v2384 = vld [vmem:[%s2 + $0x48] sm:$0xff]
  %v2385 = vmul.f32 %v2375, %v2284
  %v2386 = vmul.f32 %v2376, %v2294
  %v2387 = vmul.f32 %v2377, %v2304
  %v2388 = vmul.f32 %v2378, %v2314
  %v2389 = vmul.f32 %v2379, %v2324
  %v2390 = vmul.f32 %v2380, %v2334
  %v2391 = vmul.f32 %v2381, %v2344
  %v2392 = vmul.f32 %v2382, %v2354
  %v2393 = vmul.f32 %v2383, %v2364
  %v2394 = vmul.f32 %v2384, %v2374
  %v2395 = vld [vmem:[%s3] sm:$0xff]
  %v2396 = vld [vmem:[%s3 + $0x8] sm:$0xff]
  %v2397 = vld [vmem:[%s3 + $0x10] sm:$0xff]
  %v2398 = vld [vmem:[%s3 + $0x18] sm:$0xff]
  %v2399 = vld [vmem:[%s3 + $0x20] sm:$0xff]
  %v2400 = vld [vmem:[%s3 + $0x28] sm:$0xff]
  %v2401 = vld [vmem:[%s3 + $0x30] sm:$0xff]
  %v2402 = vld [vmem:[%s3 + $0x38] sm:$0xff]
  %v2403 = vld [vmem:[%s3 + $0x40] sm:$0xff]
  %v2404 = vld [vmem:[%s3 + $0x48] sm:$0xff]
  %v2405 = vmul.f32 %v2215, %v2385
  %v2406 = vmul.f32 %v2216, %v2386
  %v2407 = vmul.f32 %v2217, %v2387
  %v2408 = vmul.f32 %v2218, %v2388
  %v2409 = vmul.f32 %v2219, %v2389
  %v2410 = vmul.f32 %v2220, %v2390
  %v2411 = vmul.f32 %v2221, %v2391
  %v2412 = vmul.f32 %v2222, %v2392
  %v2413 = vmul.f32 %v2223, %v2393
  %v2414 = vmul.f32 %v2224, %v2394
  %v2415 = vsub.f32 %v2395, %v2405
  %v2416 = vsub.f32 %v2396, %v2406
  %v2417 = vsub.f32 %v2397, %v2407
  %v2418 = vsub.f32 %v2398, %v2408
  %v2419 = vsub.f32 %v2399, %v2409
  %v2420 = vsub.f32 %v2400, %v2410
  %v2421 = vsub.f32 %v2401, %v2411
  %v2422 = vsub.f32 %v2402, %v2412
  %v2423 = vsub.f32 %v2403, %v2413
  %v2424 = vsub.f32 %v2404, %v2414
  %2426 = vset.pattern.permute.xlu0 0
  %2427 = vperm.xlu0 %2426, %v2385
  %v2428 = vpop.permute.xlu0 %2427
  %2431 = vset.pattern.permute.xlu0 0
  %2432 = vperm.xlu0 %2431, %v2386
  %v2433 = vpop.permute.xlu0 %2432
  %2436 = vset.pattern.permute.xlu0 0
  %2437 = vperm.xlu0 %2436, %v2387
  %v2438 = vpop.permute.xlu0 %2437
  %2441 = vset.pattern.permute.xlu0 0
  %2442 = vperm.xlu0 %2441, %v2388
  %v2443 = vpop.permute.xlu0 %2442
  %2446 = vset.pattern.permute.xlu0 0
  %2447 = vperm.xlu0 %2446, %v2389
  %v2448 = vpop.permute.xlu0 %2447
  %2451 = vset.pattern.permute.xlu0 0
  %2452 = vperm.xlu0 %2451, %v2390
  %v2453 = vpop.permute.xlu0 %2452
  %2456 = vset.pattern.permute.xlu0 0
  %2457 = vperm.xlu0 %2456, %v2391
  %v2458 = vpop.permute.xlu0 %2457
  %2461 = vset.pattern.permute.xlu0 0
  %2462 = vperm.xlu0 %2461, %v2392
  %v2463 = vpop.permute.xlu0 %2462
  %2466 = vset.pattern.permute.xlu0 0
  %2467 = vperm.xlu0 %2466, %v2393
  %v2468 = vpop.permute.xlu0 %2467
  %2471 = vset.pattern.permute.xlu0 0
  %2472 = vperm.xlu0 %2471, %v2394
  %v2473 = vpop.permute.xlu0 %2472
  %v2475 = vmul.f32 %v1895, %v2428
  %v2476 = vmul.f32 %v1896, %v2428
  %v2477 = vmul.f32 %v1897, %v2428
  %v2478 = vmul.f32 %v1898, %v2428
  %v2479 = vmul.f32 %v1899, %v2428
  %v2480 = vmul.f32 %v1900, %v2428
  %v2481 = vmul.f32 %v1901, %v2428
  %v2482 = vmul.f32 %v1902, %v2433
  %v2483 = vmul.f32 %v1903, %v2433
  %v2484 = vmul.f32 %v1904, %v2433
  %v2485 = vmul.f32 %v1905, %v2433
  %v2486 = vmul.f32 %v1906, %v2433
  %v2487 = vmul.f32 %v1907, %v2433
  %v2488 = vmul.f32 %v1908, %v2433
  %v2489 = vmul.f32 %v1909, %v2438
  %v2490 = vmul.f32 %v1910, %v2438
  %v2491 = vmul.f32 %v1911, %v2438
  %v2492 = vmul.f32 %v1912, %v2438
  %v2493 = vmul.f32 %v1913, %v2438
  %v2494 = vmul.f32 %v1914, %v2438
  %v2495 = vmul.f32 %v1915, %v2438
  %v2496 = vmul.f32 %v1916, %v2443
  %v2497 = vmul.f32 %v1917, %v2443
  %v2498 = vmul.f32 %v1918, %v2443
  %v2499 = vmul.f32 %v1919, %v2443
  %v2500 = vmul.f32 %v1920, %v2443
  %v2501 = vmul.f32 %v1921, %v2443
  %v2502 = vmul.f32 %v1922, %v2443
  %v2503 = vmul.f32 %v1923, %v2448
  %v2504 = vmul.f32 %v1924, %v2448
  %v2505 = vmul.f32 %v1925, %v2448
  %v2506 = vmul.f32 %v1926, %v2448
  %v2507 = vmul.f32 %v1927, %v2448
  %v2508 = vmul.f32 %v1928, %v2448
  %v2509 = vmul.f32 %v1929, %v2448
  %v2510 = vmul.f32 %v1930, %v2453
  %v2511 = vmul.f32 %v1931, %v2453
  %v2512 = vmul.f32 %v1932, %v2453
  %v2513 = vmul.f32 %v1933, %v2453
  %v2514 = vmul.f32 %v1934, %v2453
  %v2515 = vmul.f32 %v1935, %v2453
  %v2516 = vmul.f32 %v1936, %v2453
  %v2517 = vmul.f32 %v1937, %v2458
  %v2518 = vmul.f32 %v1938, %v2458
  %v2519 = vmul.f32 %v1939, %v2458
  %v2520 = vmul.f32 %v1940, %v2458
  %v2521 = vmul.f32 %v1941, %v2458
  %v2522 = vmul.f32 %v1942, %v2458
  %v2523 = vmul.f32 %v1943, %v2458
  %v2524 = vmul.f32 %v1944, %v2463
  %v2525 = vmul.f32 %v1945, %v2463
  %v2526 = vmul.f32 %v1946, %v2463
  %v2527 = vmul.f32 %v1947, %v2463
  %v2528 = vmul.f32 %v1948, %v2463
  %v2529 = vmul.f32 %v1949, %v2463
  %v2530 = vmul.f32 %v1950, %v2463
  %v2531 = vmul.f32 %v1951, %v2468
  %v2532 = vmul.f32 %v1952, %v2468
  %v2533 = vmul.f32 %v1953, %v2468
  %v2534 = vmul.f32 %v1954, %v2468
  %v2535 = vmul.f32 %v1955, %v2468
  %v2536 = vmul.f32 %v1956, %v2468
  %v2537 = vmul.f32 %v1957, %v2468
  %v2538 = vmul.f32 %v1958, %v2473
  %v2539 = vmul.f32 %v1959, %v2473
  %v2540 = vmul.f32 %v1960, %v2473
  %v2541 = vmul.f32 %v1961, %v2473
  %v2542 = vmul.f32 %v1962, %v2473
  %v2543 = vmul.f32 %v1963, %v2473
  %v2544 = vmul.f32 %v1964, %v2473
  %2546 = vset.pattern.permute.xlu0 0
  %2547 = vperm.xlu0 %2546, %v2415
  %v2548 = vpop.permute.xlu0 %2547
  %2551 = vset.pattern.permute.xlu0 0
  %2552 = vperm.xlu0 %2551, %v2416
  %v2553 = vpop.permute.xlu0 %2552
  %2556 = vset.pattern.permute.xlu0 0
  %2557 = vperm.xlu0 %2556, %v2417
  %v2558 = vpop.permute.xlu0 %2557
  %2561 = vset.pattern.permute.xlu0 0
  %2562 = vperm.xlu0 %2561, %v2418
  %v2563 = vpop.permute.xlu0 %2562
  %2566 = vset.pattern.permute.xlu0 0
  %2567 = vperm.xlu0 %2566, %v2419
  %v2568 = vpop.permute.xlu0 %2567
  %2571 = vset.pattern.permute.xlu0 0
  %2572 = vperm.xlu0 %2571, %v2420
  %v2573 = vpop.permute.xlu0 %2572
  %2576 = vset.pattern.permute.xlu0 0
  %2577 = vperm.xlu0 %2576, %v2421
  %v2578 = vpop.permute.xlu0 %2577
  %2581 = vset.pattern.permute.xlu0 0
  %2582 = vperm.xlu0 %2581, %v2422
  %v2583 = vpop.permute.xlu0 %2582
  %2586 = vset.pattern.permute.xlu0 0
  %2587 = vperm.xlu0 %2586, %v2423
  %v2588 = vpop.permute.xlu0 %2587
  %2591 = vset.pattern.permute.xlu0 0
  %2592 = vperm.xlu0 %2591, %v2424
  %v2593 = vpop.permute.xlu0 %2592
  %v2595 = vadd.f32 %v2475, %v2548
  %v2596 = vadd.f32 %v2476, %v2548
  %v2597 = vadd.f32 %v2477, %v2548
  %v2598 = vadd.f32 %v2478, %v2548
  %v2599 = vadd.f32 %v2479, %v2548
  %v2600 = vadd.f32 %v2480, %v2548
  %v2601 = vadd.f32 %v2481, %v2548
  %v2602 = vadd.f32 %v2482, %v2553
  %v2603 = vadd.f32 %v2483, %v2553
  %v2604 = vadd.f32 %v2484, %v2553
  %v2605 = vadd.f32 %v2485, %v2553
  %v2606 = vadd.f32 %v2486, %v2553
  %v2607 = vadd.f32 %v2487, %v2553
  %v2608 = vadd.f32 %v2488, %v2553
  %v2609 = vadd.f32 %v2489, %v2558
  %v2610 = vadd.f32 %v2490, %v2558
  %v2611 = vadd.f32 %v2491, %v2558
  %v2612 = vadd.f32 %v2492, %v2558
  %v2613 = vadd.f32 %v2493, %v2558
  %v2614 = vadd.f32 %v2494, %v2558
  %v2615 = vadd.f32 %v2495, %v2558
  %v2616 = vadd.f32 %v2496, %v2563
  %v2617 = vadd.f32 %v2497, %v2563
  %v2618 = vadd.f32 %v2498, %v2563
  %v2619 = vadd.f32 %v2499, %v2563
  %v2620 = vadd.f32 %v2500, %v2563
  %v2621 = vadd.f32 %v2501, %v2563
  %v2622 = vadd.f32 %v2502, %v2563
  %v2623 = vadd.f32 %v2503, %v2568
  %v2624 = vadd.f32 %v2504, %v2568
  %v2625 = vadd.f32 %v2505, %v2568
  %v2626 = vadd.f32 %v2506, %v2568
  %v2627 = vadd.f32 %v2507, %v2568
  %v2628 = vadd.f32 %v2508, %v2568
  %v2629 = vadd.f32 %v2509, %v2568
  %v2630 = vadd.f32 %v2510, %v2573
  %v2631 = vadd.f32 %v2511, %v2573
  %v2632 = vadd.f32 %v2512, %v2573
  %v2633 = vadd.f32 %v2513, %v2573
  %v2634 = vadd.f32 %v2514, %v2573
  %v2635 = vadd.f32 %v2515, %v2573
  %v2636 = vadd.f32 %v2516, %v2573
  %v2637 = vadd.f32 %v2517, %v2578
  %v2638 = vadd.f32 %v2518, %v2578
  %v2639 = vadd.f32 %v2519, %v2578
  %v2640 = vadd.f32 %v2520, %v2578
  %v2641 = vadd.f32 %v2521, %v2578
  %v2642 = vadd.f32 %v2522, %v2578
  %v2643 = vadd.f32 %v2523, %v2578
  %v2644 = vadd.f32 %v2524, %v2583
  %v2645 = vadd.f32 %v2525, %v2583
  %v2646 = vadd.f32 %v2526, %v2583
  %v2647 = vadd.f32 %v2527, %v2583
  %v2648 = vadd.f32 %v2528, %v2583
  %v2649 = vadd.f32 %v2529, %v2583
  %v2650 = vadd.f32 %v2530, %v2583
  %v2651 = vadd.f32 %v2531, %v2588
  %v2652 = vadd.f32 %v2532, %v2588
  %v2653 = vadd.f32 %v2533, %v2588
  %v2654 = vadd.f32 %v2534, %v2588
  %v2655 = vadd.f32 %v2535, %v2588
  %v2656 = vadd.f32 %v2536, %v2588
  %v2657 = vadd.f32 %v2537, %v2588
  %v2658 = vadd.f32 %v2538, %v2593
  %v2659 = vadd.f32 %v2539, %v2593
  %v2660 = vadd.f32 %v2540, %v2593
  %v2661 = vadd.f32 %v2541, %v2593
  %v2662 = vadd.f32 %v2542, %v2593
  %v2663 = vadd.f32 %v2543, %v2593
  %v2664 = vadd.f32 %v2544, %v2593
  %2665 = vst [vmem:[%s4] sm:$0xff] %v2595
  %2666 = vst [vmem:[%s4 + $0x8] sm:$0xff] %v2596
  %2667 = vst [vmem:[%s4 + $0x10] sm:$0xff] %v2597
  %2668 = vst [vmem:[%s4 + $0x18] sm:$0xff] %v2598
  %2669 = vst [vmem:[%s4 + $0x20] sm:$0xff] %v2599
  %2670 = vst [vmem:[%s4 + $0x28] sm:$0xff] %v2600
  %2671 = vst.msk [vmem:[%s4 + $0x30] sm:$0xff] %vm1830, %v2601
  %2672 = vst [vmem:[%s4 + $0x38] sm:$0xff] %v2602
  %2673 = vst [vmem:[%s4 + $0x40] sm:$0xff] %v2603
  %2674 = vst [vmem:[%s4 + $0x48] sm:$0xff] %v2604
  %2675 = vst [vmem:[%s4 + $0x50] sm:$0xff] %v2605
  %2676 = vst [vmem:[%s4 + $0x58] sm:$0xff] %v2606
  %2677 = vst [vmem:[%s4 + $0x60] sm:$0xff] %v2607
  %2678 = vst.msk [vmem:[%s4 + $0x68] sm:$0xff] %vm1830, %v2608
  %2679 = vst [vmem:[%s4 + $0x70] sm:$0xff] %v2609
  %2680 = vst [vmem:[%s4 + $0x78] sm:$0xff] %v2610
  %2681 = vst [vmem:[%s4 + $0x80] sm:$0xff] %v2611
  %2682 = vst [vmem:[%s4 + $0x88] sm:$0xff] %v2612
  %2683 = vst [vmem:[%s4 + $0x90] sm:$0xff] %v2613
  %2684 = vst [vmem:[%s4 + $0x98] sm:$0xff] %v2614
  %2685 = vst.msk [vmem:[%s4 + $0xa0] sm:$0xff] %vm1830, %v2615
  %2686 = vst [vmem:[%s4 + $0xa8] sm:$0xff] %v2616
  %2687 = vst [vmem:[%s4 + $0xb0] sm:$0xff] %v2617
  %2688 = vst [vmem:[%s4 + $0xb8] sm:$0xff] %v2618
  %2689 = vst [vmem:[%s4 + $0xc0] sm:$0xff] %v2619
  %2690 = vst [vmem:[%s4 + $0xc8] sm:$0xff] %v2620
  %2691 = vst [vmem:[%s4 + $0xd0] sm:$0xff] %v2621
  %2692 = vst.msk [vmem:[%s4 + $0xd8] sm:$0xff] %vm1830, %v2622
  %2693 = vst [vmem:[%s4 + $0xe0] sm:$0xff] %v2623
  %2694 = vst [vmem:[%s4 + $0xe8] sm:$0xff] %v2624
  %2695 = vst [vmem:[%s4 + $0xf0] sm:$0xff] %v2625
  %2696 = vst [vmem:[%s4 + $0xf8] sm:$0xff] %v2626
  %2697 = vst [vmem:[%s4 + $0x100] sm:$0xff] %v2627
  %2698 = vst [vmem:[%s4 + $0x108] sm:$0xff] %v2628
  %2699 = vst.msk [vmem:[%s4 + $0x110] sm:$0xff] %vm1830, %v2629
  %2700 = vst [vmem:[%s4 + $0x118] sm:$0xff] %v2630
  %2701 = vst [vmem:[%s4 + $0x120] sm:$0xff] %v2631
  %2702 = vst [vmem:[%s4 + $0x128] sm:$0xff] %v2632
  %2703 = vst [vmem:[%s4 + $0x130] sm:$0xff] %v2633
  %2704 = vst [vmem:[%s4 + $0x138] sm:$0xff] %v2634
  %2705 = vst [vmem:[%s4 + $0x140] sm:$0xff] %v2635
  %2706 = vst.msk [vmem:[%s4 + $0x148] sm:$0xff] %vm1830, %v2636
  %2707 = vst [vmem:[%s4 + $0x150] sm:$0xff] %v2637
  %2708 = vst [vmem:[%s4 + $0x158] sm:$0xff] %v2638
  %2709 = vst [vmem:[%s4 + $0x160] sm:$0xff] %v2639
  %2710 = vst [vmem:[%s4 + $0x168] sm:$0xff] %v2640
  %2711 = vst [vmem:[%s4 + $0x170] sm:$0xff] %v2641
  %2712 = vst [vmem:[%s4 + $0x178] sm:$0xff] %v2642
  %2713 = vst.msk [vmem:[%s4 + $0x180] sm:$0xff] %vm1830, %v2643
  %2714 = vst [vmem:[%s4 + $0x188] sm:$0xff] %v2644
  %2715 = vst [vmem:[%s4 + $0x190] sm:$0xff] %v2645
  %2716 = vst [vmem:[%s4 + $0x198] sm:$0xff] %v2646
  %2717 = vst [vmem:[%s4 + $0x1a0] sm:$0xff] %v2647
  %2718 = vst [vmem:[%s4 + $0x1a8] sm:$0xff] %v2648
  %2719 = vst [vmem:[%s4 + $0x1b0] sm:$0xff] %v2649
  %2720 = vst.msk [vmem:[%s4 + $0x1b8] sm:$0xff] %vm1830, %v2650
  %2721 = vst [vmem:[%s4 + $0x1c0] sm:$0xff] %v2651
  %2722 = vst [vmem:[%s4 + $0x1c8] sm:$0xff] %v2652
  %2723 = vst [vmem:[%s4 + $0x1d0] sm:$0xff] %v2653
  %2724 = vst [vmem:[%s4 + $0x1d8] sm:$0xff] %v2654
  %2725 = vst [vmem:[%s4 + $0x1e0] sm:$0xff] %v2655
  %2726 = vst [vmem:[%s4 + $0x1e8] sm:$0xff] %v2656
  %2727 = vst.msk [vmem:[%s4 + $0x1f0] sm:$0xff] %vm1830, %v2657
  %2728 = vst [vmem:[%s4 + $0x1f8] sm:$0xff] %v2658
  %2729 = vst [vmem:[%s4 + $0x200] sm:$0xff] %v2659
  %2730 = vst [vmem:[%s4 + $0x208] sm:$0xff] %v2660
  %2731 = vst [vmem:[%s4 + $0x210] sm:$0xff] %v2661
  %2732 = vst [vmem:[%s4 + $0x218] sm:$0xff] %v2662
  %2733 = vst [vmem:[%s4 + $0x220] sm:$0xff] %v2663
  %2734 = vst.msk [vmem:[%s4 + $0x228] sm:$0xff] %vm1830, %v2664
  // Predicated region
  $region18: #{conv_bn_forward.1} parent=0 // pred_check
    _
  $region19: #{conv_bn_forward.1} parent=0 // pred_check_branch
    %2736 = sbr.rel (0) target = $region21
  $region20: #{conv_bn_forward.1} parent=0 // pred_region
    _
  $region21: #{conv_bn_forward.1} parent=0 // pred_fallthru
    _
  // Predicated region
  $region22: #{conv_bn_forward.1} parent=0 // pred_check
    _
  $region23: #{conv_bn_forward.1} parent=0 // pred_check_branch
    %2738 = sbr.rel (0) target = $region25
  $region24: #{conv_bn_forward.1} parent=0 // pred_region
    _
  $region25: #{conv_bn_forward.1} parent=0 // pred_fallthru
    _

</llo_original>
